<compile_context>
chip_gen: v6e
topology: v6e:2x2x1
jax: 0.10.0
libtpu: 0.0.40
codegen_flags: <defaults>
</compile_context>

<pallas_src>
import functools
import math

import jax
import jax.numpy as jnp
from jax import lax
from jax.experimental import pallas as pl
from jax.experimental.pallas import tpu as pltpu


def _lstm_attention_kernel(B, S, x_ref, mask_ref, wih_ref, whh_ref, b_ref,
                           wfc_ref, bfc_ref, o_ref, y_ref):
    """Whole-batch LSTM + self-attention + fc in one invocation.

    x_ref    : (S*B, D)    time-major rows (row t*B + b == x[b, t])
    mask_ref : (S*B, S*B)  additive attention mask: 0 if same batch, -1e30 else
    wih_ref  : (D, 4H)     fused input->hidden weights, gate cols [i, f, o, g]
    whh_ref  : (H, 4H)     fused hidden->hidden weights
    b_ref    : (1, 4H)     fused bias (b_ih + b_hh)
    wfc_ref  : (H, OP)     fc weight, zero-padded to lane-dense OP
    bfc_ref  : (1, OP)     fc bias, zero-padded
    o_ref    : (S*B, OP)   output, time-major rows (padded lanes)
    y_ref    : (S*B, H)    VMEM scratch holding the LSTM hidden states
    """
    H4 = whh_ref.shape[1]
    H = H4 // 4
    SB = S * B

    # Input projection for every (t, b) row at once: one lane-dense MXU matmul.
    xg = jnp.dot(x_ref[...], wih_ref[...],
                 preferred_element_type=jnp.float32) + b_ref[...]      # (S*B, 4H)

    whh = whh_ref[...]                                                  # (H, 4H)

    # Static lane mask: sigmoid on the [i, f, o] lanes, tanh on the [g] lanes.
    lane = lax.broadcasted_iota(jnp.int32, (B, H4), 1)
    sig_mask = lane < 3 * H

    h = jnp.zeros((B, H), jnp.float32)
    c = jnp.zeros((B, H), jnp.float32)

    # S is static -> fully unrolled recurrence; all slices / stores are static.
    for t in range(S):
        z = xg[t * B:(t + 1) * B] + jnp.dot(
            h, whh, preferred_element_type=jnp.float32)                 # (B, 4H)
        act = jnp.where(sig_mask, jax.nn.sigmoid(z), jnp.tanh(z))
        i_g = act[:, 0:H]
        f_g = act[:, H:2 * H]
        o_g = act[:, 2 * H:3 * H]
        g_g = act[:, 3 * H:4 * H]
        c = f_g * c + i_g * g_g
        h = o_g * jnp.tanh(c)
        y_ref[t * B:(t + 1) * B, :] = h          # one store per timestep

    # Flattened self-attention over all (t, b) rows with a same-batch mask.
    #   gamma = y y^T  (cross-batch entries masked to -1e30 BEFORE the row max,
    #   so softmax rows never leak across batch elements: exp(-1e30 - m) == 0).
    y = y_ref[...]                                                      # (S*B, H)
    gamma = lax.dot_general(y, y, (((1,), (1,)), ((), ())),
                            preferred_element_type=jnp.float32)         # (S*B, S*B)
    gamma = gamma + mask_ref[...]
    gamma_max = jnp.max(gamma, axis=-1, keepdims=True)
    e = jnp.exp(gamma - gamma_max)
    denom = jnp.sum(e, axis=-1, keepdims=True)
    alpha = e / denom                           # exact divide: denom is tiny
    beta = jnp.dot(alpha, y, preferred_element_type=jnp.float32)        # (S*B, H)

    # Final linear layer: one MXU matmul, one unmasked lane-dense slab store.
    out = jnp.dot(beta, wfc_ref[...],
                  preferred_element_type=jnp.float32) + bfc_ref[...]
    o_ref[...] = out.astype(o_ref.dtype)


def prepare_lstm_attention_params(w_ih, w_hh, b_ih, b_hh, w_fc, b_fc):
    """One-time layout glue (hoisted out of the per-call path).

    PyTorch layout in: w_ih (4H, D), w_hh (4H, H), b_ih/b_hh (4H,) with gate
    row order [i, f, g, o]; w_fc (O, H), b_fc (O,).
    Returns fused / lane-dense kernel operands.
    """
    H = w_hh.shape[1]
    D = w_ih.shape[1]
    O = w_fc.shape[0]
    OP = ((O + 127) // 128) * 128                # lane-dense output width

    perm = (0, 1, 3, 2)                          # [i, f, g, o] -> [i, f, o, g]
    wih4 = w_ih.reshape(4, H, D)
    whh4 = w_hh.reshape(4, H, H)
    b4 = (b_ih + b_hh).reshape(4, H)

    wih_f = jnp.concatenate([wih4[k] for k in perm], axis=0).T          # (D, 4H)
    whh_f = jnp.concatenate([whh4[k] for k in perm], axis=0).T          # (H, 4H)
    b_f = jnp.concatenate([b4[k] for k in perm], axis=0)[None, :]       # (1, 4H)

    wfc_p = jnp.zeros((H, OP), jnp.float32).at[:, :O].set(w_fc.T)       # (H, OP)
    bfc_p = jnp.zeros((1, OP), jnp.float32).at[:, :O].set(b_fc[None, :])
    return (wih_f, whh_f, b_f, wfc_p, bfc_p)


def lstm_attention_fwd(x, params, output_size):
    """x: (B, S, D) float32; params from prepare_lstm_attention_params.
    Returns (B, S, output_size)."""
    wih_f, whh_f, b_f, wfc_p, bfc_p = params
    B, S, D = x.shape
    H4 = whh_f.shape[1]
    H = H4 // 4
    OP = wfc_p.shape[1]
    SB = S * B

    # Cheap XLA-side data-layout glue (time-major rows; static attention mask).
    x2d = jnp.swapaxes(x, 0, 1).reshape(SB, D)
    row_b = jnp.tile(jnp.arange(B, dtype=jnp.int32), S)       # batch id of row
    attn_mask = jnp.where(row_b[:, None] == row_b[None, :],
                          0.0, -1e30).astype(jnp.float32)     # (SB, SB)

    out_tm = pl.pallas_call(
        functools.partial(_lstm_attention_kernel, B, S),
        out_shape=jax.ShapeDtypeStruct((SB, OP), jnp.float32),
        in_specs=[pl.BlockSpec(memory_space=pltpu.MemorySpace.VMEM)] * 7,
        out_specs=pl.BlockSpec(memory_space=pltpu.MemorySpace.VMEM),
        scratch_shapes=[pltpu.VMEM((SB, H), jnp.float32)],
    )(x2d, attn_mask, wih_f, whh_f, b_f, wfc_p, bfc_p)

    out = jnp.swapaxes(out_tm.reshape(S, B, OP), 0, 1)         # (B, S, OP)
    return out[:, :, :output_size]                             # drop lane padding


def lstm_attention(x, w_ih, w_hh, b_ih, b_hh, w_fc, b_fc):
    """Convenience wrapper: prepare params (normally done once) + forward."""
    params = prepare_lstm_attention_params(w_ih, w_hh, b_ih, b_hh, w_fc, b_fc)
    return lstm_attention_fwd(x, params, w_fc.shape[0])


def lstm_attention_reference(x, w_ih, w_hh, b_ih, b_hh, w_fc, b_fc):
    """Pure-JAX reference with identical semantics (PyTorch LSTM + attention)."""
    B, S, D = x.shape
    H = w_hh.shape[1]
    wih_t = w_ih.T
    whh_t = w_hh.T
    b = b_ih + b_hh

    def cell(carry, xt):
        h, c = carry
        gates = xt @ wih_t + h @ whh_t + b
        i = jax.nn.sigmoid(gates[:, 0 * H:1 * H])
        f = jax.nn.sigmoid(gates[:, 1 * H:2 * H])
        g = jnp.tanh(gates[:, 2 * H:3 * H])
        o = jax.nn.sigmoid(gates[:, 3 * H:4 * H])
        c_new = f * c + i * g
        h_new = o * jnp.tanh(c_new)
        return (h_new, c_new), h_new

    h0 = jnp.zeros((B, H), jnp.float32)
    c0 = jnp.zeros((B, H), jnp.float32)
    _, ys = lax.scan(cell, (h0, c0), jnp.swapaxes(x, 0, 1))
    y = jnp.swapaxes(ys, 0, 1)                          # (B, S, H)
    gamma = jnp.einsum("bsh,bth->bst", y, y)
    alpha = jax.nn.softmax(gamma, axis=-1)
    beta = jnp.einsum("bst,bth->bsh", alpha, y)
    return beta @ w_fc.T + b_fc


if __name__ == "__main__":
    # Small shapes consistent with the module's forward.
    B, S = 2, 8
    input_size, hidden_size, output_size = 16, 32, 8
    memory_depth = 4  # unused in forward (matches the PyTorch module)

    key = jax.random.PRNGKey(0)
    kx, k1, k2, k3, k4, k5, k6 = jax.random.split(key, 7)

    x = jax.random.normal(kx, (B, S, input_size), jnp.float32)

    # Deterministic PyTorch-style uniform(-1/sqrt(H), 1/sqrt(H)) init.
    k_lstm = 1.0 / math.sqrt(hidden_size)
    w_ih = jax.random.uniform(k1, (4 * hidden_size, input_size), jnp.float32,
                              -k_lstm, k_lstm)
    w_hh = jax.random.uniform(k2, (4 * hidden_size, hidden_size), jnp.float32,
                              -k_lstm, k_lstm)
    b_ih = jax.random.uniform(k3, (4 * hidden_size,), jnp.float32, -k_lstm, k_lstm)
    b_hh = jax.random.uniform(k4, (4 * hidden_size,), jnp.float32, -k_lstm, k_lstm)
    w_fc = jax.random.uniform(k5, (output_size, hidden_size), jnp.float32,
                              -k_lstm, k_lstm)
    b_fc = jax.random.uniform(k6, (output_size,), jnp.float32, -k_lstm, k_lstm)

    # Weight layout prep is done ONCE (hoisted out of the per-call path).
    params = prepare_lstm_attention_params(w_ih, w_hh, b_ih, b_hh, w_fc, b_fc)
    params = jax.block_until_ready(params)

    out = lstm_attention_fwd(x, params, output_size)
    out = jax.block_until_ready(out)

    ref = lstm_attention_reference(x, w_ih, w_hh, b_ih, b_hh, w_fc, b_fc)
    ref = jax.block_until_ready(ref)

    assert out.shape == (B, S, output_size)
    # All kernel math is f32 with an exact softmax divide; tolerance covers
    # only op-ordering / transcendental-implementation differences.
    assert jnp.allclose(out, ref, rtol=1e-3, atol=1e-3), (
        f"max abs diff = {jnp.max(jnp.abs(out - ref))}")

    print("KERNEL_OK")
</pallas_src>

<mosaic_0001>
module attributes {stable_mosaic.version = 11 : i64} {
  func.func @_lstm_attention_kernel(%arg0: memref<16x16xf32, #tpu.memory_space<vmem>>, %arg1: memref<16x16xf32, #tpu.memory_space<vmem>>, %arg2: memref<16x128xf32, #tpu.memory_space<vmem>>, %arg3: memref<32x128xf32, #tpu.memory_space<vmem>>, %arg4: memref<1x128xf32, #tpu.memory_space<vmem>>, %arg5: memref<32x128xf32, #tpu.memory_space<vmem>>, %arg6: memref<1x128xf32, #tpu.memory_space<vmem>>, %arg7: memref<16x128xf32, #tpu.memory_space<vmem>>, %arg8: memref<16x32xf32, #tpu.memory_space<vmem>>) attributes {dimension_semantics = [], scalar_prefetch = 0 : i64, scratch_operands = 1 : i64, tpu.core_type = #tpu.core_type<tc>} {
    %c0 = arith.constant 0 : index
    %c0_0 = arith.constant 0 : index
    %0 = vector.load %arg0[%c0, %c0_0] : memref<16x16xf32, #tpu.memory_space<vmem>>, vector<16x16xf32>
    %c0_1 = arith.constant 0 : index
    %c0_2 = arith.constant 0 : index
    %1 = vector.load %arg2[%c0_1, %c0_2] : memref<16x128xf32, #tpu.memory_space<vmem>>, vector<16x128xf32>
    %cst = arith.constant dense<0.000000e+00> : vector<16x128xf32>
    %2 = tpu.matmul %0, %1, %cst {dimension_numbers = #tpu.dot_dimension_numbers<[1], [0], [0], [1], [0, 0, 1, 1], [], []>} : vector<16x16xf32>, vector<16x128xf32>, vector<16x128xf32> -> vector<16x128xf32>
    %c0_3 = arith.constant 0 : index
    %c0_4 = arith.constant 0 : index
    %3 = vector.load %arg4[%c0_3, %c0_4] : memref<1x128xf32, #tpu.memory_space<vmem>>, vector<1x128xf32>
    %4 = vector.broadcast %3 : vector<1x128xf32> to vector<16x128xf32>
    %5 = arith.addf %2, %4 : vector<16x128xf32>
    %c0_5 = arith.constant 0 : index
    %c0_6 = arith.constant 0 : index
    %6 = vector.load %arg3[%c0_5, %c0_6] : memref<32x128xf32, #tpu.memory_space<vmem>>, vector<32x128xf32>
    %7 = tpu.iota {dimensions = array<i32: 1>} : vector<2x128xi32>
    %c96_i32 = arith.constant 96 : i32
    %8 = vector.broadcast %c96_i32 : i32 to vector<2x128xi32>
    %9 = arith.cmpi slt, %7, %8 : vector<2x128xi32>
    %cst_7 = arith.constant 0.000000e+00 : f32
    %10 = vector.broadcast %cst_7 : f32 to vector<2x32xf32>
    %cst_8 = arith.constant 0.000000e+00 : f32
    %11 = vector.broadcast %cst_8 : f32 to vector<2x32xf32>
    %12 = vector.extract_strided_slice %5 {offsets = [0, 0], sizes = [2, 128], strides = [1, 1]} : vector<16x128xf32> to vector<2x128xf32>
    %cst_9 = arith.constant dense<0.000000e+00> : vector<2x128xf32>
    %13 = tpu.matmul %10, %6, %cst_9 {dimension_numbers = #tpu.dot_dimension_numbers<[1], [0], [0], [1], [0, 0, 1, 1], [], []>} : vector<2x32xf32>, vector<32x128xf32>, vector<2x128xf32> -> vector<2x128xf32>
    %14 = arith.addf %12, %13 : vector<2x128xf32>
    %15 = arith.negf %14 : vector<2x128xf32>
    %16 = math.exp %15 : vector<2x128xf32>
    %cst_10 = arith.constant 1.000000e+00 : f32
    %17 = vector.broadcast %cst_10 : f32 to vector<2x128xf32>
    %18 = arith.addf %17, %16 : vector<2x128xf32>
    %19 = arith.divf %17, %18 : vector<2x128xf32>
    %20 = math.tanh %14 : vector<2x128xf32>
    %21 = arith.select %9, %19, %20 : vector<2x128xi1>, vector<2x128xf32>
    %22 = vector.extract_strided_slice %21 {offsets = [0, 0], sizes = [2, 32], strides = [1, 1]} : vector<2x128xf32> to vector<2x32xf32>
    %23 = vector.extract_strided_slice %21 {offsets = [0, 32], sizes = [2, 32], strides = [1, 1]} : vector<2x128xf32> to vector<2x32xf32>
    %24 = vector.extract_strided_slice %21 {offsets = [0, 64], sizes = [2, 32], strides = [1, 1]} : vector<2x128xf32> to vector<2x32xf32>
    %25 = vector.extract_strided_slice %21 {offsets = [0, 96], sizes = [2, 32], strides = [1, 1]} : vector<2x128xf32> to vector<2x32xf32>
    %26 = arith.mulf %23, %11 : vector<2x32xf32>
    %27 = arith.mulf %22, %25 : vector<2x32xf32>
    %28 = arith.addf %26, %27 : vector<2x32xf32>
    %29 = math.tanh %28 : vector<2x32xf32>
    %30 = arith.mulf %24, %29 : vector<2x32xf32>
    %c0_11 = arith.constant 0 : index
    %c0_12 = arith.constant 0 : index
    %31 = vector.load %arg8[%c0_11, %c0_12] : memref<16x32xf32, #tpu.memory_space<vmem>>, vector<2x32xf32>
    tpu.vector_store %arg8[%c0_11, %c0_12], %30 {strides = array<i32>} : memref<16x32xf32, #tpu.memory_space<vmem>>, vector<2x32xf32>,
    %32 = vector.extract_strided_slice %5 {offsets = [2, 0], sizes = [2, 128], strides = [1, 1]} : vector<16x128xf32> to vector<2x128xf32>
    %cst_13 = arith.constant dense<0.000000e+00> : vector<2x128xf32>
    %33 = tpu.matmul %30, %6, %cst_13 {dimension_numbers = #tpu.dot_dimension_numbers<[1], [0], [0], [1], [0, 0, 1, 1], [], []>} : vector<2x32xf32>, vector<32x128xf32>, vector<2x128xf32> -> vector<2x128xf32>
    %34 = arith.addf %32, %33 : vector<2x128xf32>
    %35 = arith.negf %34 : vector<2x128xf32>
    %36 = math.exp %35 : vector<2x128xf32>
    %cst_14 = arith.constant 1.000000e+00 : f32
    %37 = vector.broadcast %cst_14 : f32 to vector<2x128xf32>
    %38 = arith.addf %37, %36 : vector<2x128xf32>
    %39 = arith.divf %37, %38 : vector<2x128xf32>
    %40 = math.tanh %34 : vector<2x128xf32>
    %41 = arith.select %9, %39, %40 : vector<2x128xi1>, vector<2x128xf32>
    %42 = vector.extract_strided_slice %41 {offsets = [0, 0], sizes = [2, 32], strides = [1, 1]} : vector<2x128xf32> to vector<2x32xf32>
    %43 = vector.extract_strided_slice %41 {offsets = [0, 32], sizes = [2, 32], strides = [1, 1]} : vector<2x128xf32> to vector<2x32xf32>
    %44 = vector.extract_strided_slice %41 {offsets = [0, 64], sizes = [2, 32], strides = [1, 1]} : vector<2x128xf32> to vector<2x32xf32>
    %45 = vector.extract_strided_slice %41 {offsets = [0, 96], sizes = [2, 32], strides = [1, 1]} : vector<2x128xf32> to vector<2x32xf32>
    %46 = arith.mulf %43, %28 : vector<2x32xf32>
    %47 = arith.mulf %42, %45 : vector<2x32xf32>
    %48 = arith.addf %46, %47 : vector<2x32xf32>
    %49 = math.tanh %48 : vector<2x32xf32>
    %50 = arith.mulf %44, %49 : vector<2x32xf32>
    %c2 = arith.constant 2 : index
    %c0_15 = arith.constant 0 : index
    %51 = vector.load %arg8[%c2, %c0_15] : memref<16x32xf32, #tpu.memory_space<vmem>>, vector<2x32xf32>
    tpu.vector_store %arg8[%c2, %c0_15], %50 {strides = array<i32>} : memref<16x32xf32, #tpu.memory_space<vmem>>, vector<2x32xf32>,
    %52 = vector.extract_strided_slice %5 {offsets = [4, 0], sizes = [2, 128], strides = [1, 1]} : vector<16x128xf32> to vector<2x128xf32>
    %cst_16 = arith.constant dense<0.000000e+00> : vector<2x128xf32>
    %53 = tpu.matmul %50, %6, %cst_16 {dimension_numbers = #tpu.dot_dimension_numbers<[1], [0], [0], [1], [0, 0, 1, 1], [], []>} : vector<2x32xf32>, vector<32x128xf32>, vector<2x128xf32> -> vector<2x128xf32>
    %54 = arith.addf %52, %53 : vector<2x128xf32>
    %55 = arith.negf %54 : vector<2x128xf32>
    %56 = math.exp %55 : vector<2x128xf32>
    %cst_17 = arith.constant 1.000000e+00 : f32
    %57 = vector.broadcast %cst_17 : f32 to vector<2x128xf32>
    %58 = arith.addf %57, %56 : vector<2x128xf32>
    %59 = arith.divf %57, %58 : vector<2x128xf32>
    %60 = math.tanh %54 : vector<2x128xf32>
    %61 = arith.select %9, %59, %60 : vector<2x128xi1>, vector<2x128xf32>
    %62 = vector.extract_strided_slice %61 {offsets = [0, 0], sizes = [2, 32], strides = [1, 1]} : vector<2x128xf32> to vector<2x32xf32>
    %63 = vector.extract_strided_slice %61 {offsets = [0, 32], sizes = [2, 32], strides = [1, 1]} : vector<2x128xf32> to vector<2x32xf32>
    %64 = vector.extract_strided_slice %61 {offsets = [0, 64], sizes = [2, 32], strides = [1, 1]} : vector<2x128xf32> to vector<2x32xf32>
    %65 = vector.extract_strided_slice %61 {offsets = [0, 96], sizes = [2, 32], strides = [1, 1]} : vector<2x128xf32> to vector<2x32xf32>
    %66 = arith.mulf %63, %48 : vector<2x32xf32>
    %67 = arith.mulf %62, %65 : vector<2x32xf32>
    %68 = arith.addf %66, %67 : vector<2x32xf32>
    %69 = math.tanh %68 : vector<2x32xf32>
    %70 = arith.mulf %64, %69 : vector<2x32xf32>
    %c4 = arith.constant 4 : index
    %c0_18 = arith.constant 0 : index
    %71 = vector.load %arg8[%c4, %c0_18] : memref<16x32xf32, #tpu.memory_space<vmem>>, vector<2x32xf32>
    tpu.vector_store %arg8[%c4, %c0_18], %70 {strides = array<i32>} : memref<16x32xf32, #tpu.memory_space<vmem>>, vector<2x32xf32>,
    %72 = vector.extract_strided_slice %5 {offsets = [6, 0], sizes = [2, 128], strides = [1, 1]} : vector<16x128xf32> to vector<2x128xf32>
    %cst_19 = arith.constant dense<0.000000e+00> : vector<2x128xf32>
    %73 = tpu.matmul %70, %6, %cst_19 {dimension_numbers = #tpu.dot_dimension_numbers<[1], [0], [0], [1], [0, 0, 1, 1], [], []>} : vector<2x32xf32>, vector<32x128xf32>, vector<2x128xf32> -> vector<2x128xf32>
    %74 = arith.addf %72, %73 : vector<2x128xf32>
    %75 = arith.negf %74 : vector<2x128xf32>
    %76 = math.exp %75 : vector<2x128xf32>
    %cst_20 = arith.constant 1.000000e+00 : f32
    %77 = vector.broadcast %cst_20 : f32 to vector<2x128xf32>
    %78 = arith.addf %77, %76 : vector<2x128xf32>
    %79 = arith.divf %77, %78 : vector<2x128xf32>
    %80 = math.tanh %74 : vector<2x128xf32>
    %81 = arith.select %9, %79, %80 : vector<2x128xi1>, vector<2x128xf32>
    %82 = vector.extract_strided_slice %81 {offsets = [0, 0], sizes = [2, 32], strides = [1, 1]} : vector<2x128xf32> to vector<2x32xf32>
    %83 = vector.extract_strided_slice %81 {offsets = [0, 32], sizes = [2, 32], strides = [1, 1]} : vector<2x128xf32> to vector<2x32xf32>
    %84 = vector.extract_strided_slice %81 {offsets = [0, 64], sizes = [2, 32], strides = [1, 1]} : vector<2x128xf32> to vector<2x32xf32>
    %85 = vector.extract_strided_slice %81 {offsets = [0, 96], sizes = [2, 32], strides = [1, 1]} : vector<2x128xf32> to vector<2x32xf32>
    %86 = arith.mulf %83, %68 : vector<2x32xf32>
    %87 = arith.mulf %82, %85 : vector<2x32xf32>
    %88 = arith.addf %86, %87 : vector<2x32xf32>
    %89 = math.tanh %88 : vector<2x32xf32>
    %90 = arith.mulf %84, %89 : vector<2x32xf32>
    %c6 = arith.constant 6 : index
    %c0_21 = arith.constant 0 : index
    %91 = vector.load %arg8[%c6, %c0_21] : memref<16x32xf32, #tpu.memory_space<vmem>>, vector<2x32xf32>
    tpu.vector_store %arg8[%c6, %c0_21], %90 {strides = array<i32>} : memref<16x32xf32, #tpu.memory_space<vmem>>, vector<2x32xf32>,
    %92 = vector.extract_strided_slice %5 {offsets = [8, 0], sizes = [2, 128], strides = [1, 1]} : vector<16x128xf32> to vector<2x128xf32>
    %cst_22 = arith.constant dense<0.000000e+00> : vector<2x128xf32>
    %93 = tpu.matmul %90, %6, %cst_22 {dimension_numbers = #tpu.dot_dimension_numbers<[1], [0], [0], [1], [0, 0, 1, 1], [], []>} : vector<2x32xf32>, vector<32x128xf32>, vector<2x128xf32> -> vector<2x128xf32>
    %94 = arith.addf %92, %93 : vector<2x128xf32>
    %95 = arith.negf %94 : vector<2x128xf32>
    %96 = math.exp %95 : vector<2x128xf32>
    %cst_23 = arith.constant 1.000000e+00 : f32
    %97 = vector.broadcast %cst_23 : f32 to vector<2x128xf32>
    %98 = arith.addf %97, %96 : vector<2x128xf32>
    %99 = arith.divf %97, %98 : vector<2x128xf32>
    %100 = math.tanh %94 : vector<2x128xf32>
    %101 = arith.select %9, %99, %100 : vector<2x128xi1>, vector<2x128xf32>
    %102 = vector.extract_strided_slice %101 {offsets = [0, 0], sizes = [2, 32], strides = [1, 1]} : vector<2x128xf32> to vector<2x32xf32>
    %103 = vector.extract_strided_slice %101 {offsets = [0, 32], sizes = [2, 32], strides = [1, 1]} : vector<2x128xf32> to vector<2x32xf32>
    %104 = vector.extract_strided_slice %101 {offsets = [0, 64], sizes = [2, 32], strides = [1, 1]} : vector<2x128xf32> to vector<2x32xf32>
    %105 = vector.extract_strided_slice %101 {offsets = [0, 96], sizes = [2, 32], strides = [1, 1]} : vector<2x128xf32> to vector<2x32xf32>
    %106 = arith.mulf %103, %88 : vector<2x32xf32>
    %107 = arith.mulf %102, %105 : vector<2x32xf32>
    %108 = arith.addf %106, %107 : vector<2x32xf32>
    %109 = math.tanh %108 : vector<2x32xf32>
    %110 = arith.mulf %104, %109 : vector<2x32xf32>
    %c8 = arith.constant 8 : index
    %c0_24 = arith.constant 0 : index
    %111 = vector.load %arg8[%c8, %c0_24] : memref<16x32xf32, #tpu.memory_space<vmem>>, vector<2x32xf32>
    tpu.vector_store %arg8[%c8, %c0_24], %110 {strides = array<i32>} : memref<16x32xf32, #tpu.memory_space<vmem>>, vector<2x32xf32>,
    %112 = vector.extract_strided_slice %5 {offsets = [10, 0], sizes = [2, 128], strides = [1, 1]} : vector<16x128xf32> to vector<2x128xf32>
    %cst_25 = arith.constant dense<0.000000e+00> : vector<2x128xf32>
    %113 = tpu.matmul %110, %6, %cst_25 {dimension_numbers = #tpu.dot_dimension_numbers<[1], [0], [0], [1], [0, 0, 1, 1], [], []>} : vector<2x32xf32>, vector<32x128xf32>, vector<2x128xf32> -> vector<2x128xf32>
    %114 = arith.addf %112, %113 : vector<2x128xf32>
    %115 = arith.negf %114 : vector<2x128xf32>
    %116 = math.exp %115 : vector<2x128xf32>
    %cst_26 = arith.constant 1.000000e+00 : f32
    %117 = vector.broadcast %cst_26 : f32 to vector<2x128xf32>
    %118 = arith.addf %117, %116 : vector<2x128xf32>
    %119 = arith.divf %117, %118 : vector<2x128xf32>
    %120 = math.tanh %114 : vector<2x128xf32>
    %121 = arith.select %9, %119, %120 : vector<2x128xi1>, vector<2x128xf32>
    %122 = vector.extract_strided_slice %121 {offsets = [0, 0], sizes = [2, 32], strides = [1, 1]} : vector<2x128xf32> to vector<2x32xf32>
    %123 = vector.extract_strided_slice %121 {offsets = [0, 32], sizes = [2, 32], strides = [1, 1]} : vector<2x128xf32> to vector<2x32xf32>
    %124 = vector.extract_strided_slice %121 {offsets = [0, 64], sizes = [2, 32], strides = [1, 1]} : vector<2x128xf32> to vector<2x32xf32>
    %125 = vector.extract_strided_slice %121 {offsets = [0, 96], sizes = [2, 32], strides = [1, 1]} : vector<2x128xf32> to vector<2x32xf32>
    %126 = arith.mulf %123, %108 : vector<2x32xf32>
    %127 = arith.mulf %122, %125 : vector<2x32xf32>
    %128 = arith.addf %126, %127 : vector<2x32xf32>
    %129 = math.tanh %128 : vector<2x32xf32>
    %130 = arith.mulf %124, %129 : vector<2x32xf32>
    %c10 = arith.constant 10 : index
    %c0_27 = arith.constant 0 : index
    %131 = vector.load %arg8[%c10, %c0_27] : memref<16x32xf32, #tpu.memory_space<vmem>>, vector<2x32xf32>
    tpu.vector_store %arg8[%c10, %c0_27], %130 {strides = array<i32>} : memref<16x32xf32, #tpu.memory_space<vmem>>, vector<2x32xf32>,
    %132 = vector.extract_strided_slice %5 {offsets = [12, 0], sizes = [2, 128], strides = [1, 1]} : vector<16x128xf32> to vector<2x128xf32>
    %cst_28 = arith.constant dense<0.000000e+00> : vector<2x128xf32>
    %133 = tpu.matmul %130, %6, %cst_28 {dimension_numbers = #tpu.dot_dimension_numbers<[1], [0], [0], [1], [0, 0, 1, 1], [], []>} : vector<2x32xf32>, vector<32x128xf32>, vector<2x128xf32> -> vector<2x128xf32>
    %134 = arith.addf %132, %133 : vector<2x128xf32>
    %135 = arith.negf %134 : vector<2x128xf32>
    %136 = math.exp %135 : vector<2x128xf32>
    %cst_29 = arith.constant 1.000000e+00 : f32
    %137 = vector.broadcast %cst_29 : f32 to vector<2x128xf32>
    %138 = arith.addf %137, %136 : vector<2x128xf32>
    %139 = arith.divf %137, %138 : vector<2x128xf32>
    %140 = math.tanh %134 : vector<2x128xf32>
    %141 = arith.select %9, %139, %140 : vector<2x128xi1>, vector<2x128xf32>
    %142 = vector.extract_strided_slice %141 {offsets = [0, 0], sizes = [2, 32], strides = [1, 1]} : vector<2x128xf32> to vector<2x32xf32>
    %143 = vector.extract_strided_slice %141 {offsets = [0, 32], sizes = [2, 32], strides = [1, 1]} : vector<2x128xf32> to vector<2x32xf32>
    %144 = vector.extract_strided_slice %141 {offsets = [0, 64], sizes = [2, 32], strides = [1, 1]} : vector<2x128xf32> to vector<2x32xf32>
    %145 = vector.extract_strided_slice %141 {offsets = [0, 96], sizes = [2, 32], strides = [1, 1]} : vector<2x128xf32> to vector<2x32xf32>
    %146 = arith.mulf %143, %128 : vector<2x32xf32>
    %147 = arith.mulf %142, %145 : vector<2x32xf32>
    %148 = arith.addf %146, %147 : vector<2x32xf32>
    %149 = math.tanh %148 : vector<2x32xf32>
    %150 = arith.mulf %144, %149 : vector<2x32xf32>
    %c12 = arith.constant 12 : index
    %c0_30 = arith.constant 0 : index
    %151 = vector.load %arg8[%c12, %c0_30] : memref<16x32xf32, #tpu.memory_space<vmem>>, vector<2x32xf32>
    tpu.vector_store %arg8[%c12, %c0_30], %150 {strides = array<i32>} : memref<16x32xf32, #tpu.memory_space<vmem>>, vector<2x32xf32>,
    %152 = vector.extract_strided_slice %5 {offsets = [14, 0], sizes = [2, 128], strides = [1, 1]} : vector<16x128xf32> to vector<2x128xf32>
    %cst_31 = arith.constant dense<0.000000e+00> : vector<2x128xf32>
    %153 = tpu.matmul %150, %6, %cst_31 {dimension_numbers = #tpu.dot_dimension_numbers<[1], [0], [0], [1], [0, 0, 1, 1], [], []>} : vector<2x32xf32>, vector<32x128xf32>, vector<2x128xf32> -> vector<2x128xf32>
    %154 = arith.addf %152, %153 : vector<2x128xf32>
    %155 = arith.negf %154 : vector<2x128xf32>
    %156 = math.exp %155 : vector<2x128xf32>
    %cst_32 = arith.constant 1.000000e+00 : f32
    %157 = vector.broadcast %cst_32 : f32 to vector<2x128xf32>
    %158 = arith.addf %157, %156 : vector<2x128xf32>
    %159 = arith.divf %157, %158 : vector<2x128xf32>
    %160 = math.tanh %154 : vector<2x128xf32>
    %161 = arith.select %9, %159, %160 : vector<2x128xi1>, vector<2x128xf32>
    %162 = vector.extract_strided_slice %161 {offsets = [0, 0], sizes = [2, 32], strides = [1, 1]} : vector<2x128xf32> to vector<2x32xf32>
    %163 = vector.extract_strided_slice %161 {offsets = [0, 32], sizes = [2, 32], strides = [1, 1]} : vector<2x128xf32> to vector<2x32xf32>
    %164 = vector.extract_strided_slice %161 {offsets = [0, 64], sizes = [2, 32], strides = [1, 1]} : vector<2x128xf32> to vector<2x32xf32>
    %165 = vector.extract_strided_slice %161 {offsets = [0, 96], sizes = [2, 32], strides = [1, 1]} : vector<2x128xf32> to vector<2x32xf32>
    %166 = arith.mulf %163, %148 : vector<2x32xf32>
    %167 = arith.mulf %162, %165 : vector<2x32xf32>
    %168 = arith.addf %166, %167 : vector<2x32xf32>
    %169 = math.tanh %168 : vector<2x32xf32>
    %170 = arith.mulf %164, %169 : vector<2x32xf32>
    %c14 = arith.constant 14 : index
    %c0_33 = arith.constant 0 : index
    %171 = vector.load %arg8[%c14, %c0_33] : memref<16x32xf32, #tpu.memory_space<vmem>>, vector<2x32xf32>
    tpu.vector_store %arg8[%c14, %c0_33], %170 {strides = array<i32>} : memref<16x32xf32, #tpu.memory_space<vmem>>, vector<2x32xf32>,
    %c0_34 = arith.constant 0 : index
    %c0_35 = arith.constant 0 : index
    %172 = vector.load %arg8[%c0_34, %c0_35] : memref<16x32xf32, #tpu.memory_space<vmem>>, vector<16x32xf32>
    %cst_36 = arith.constant dense<0.000000e+00> : vector<16x16xf32>
    %173 = tpu.matmul %172, %172, %cst_36 {dimension_numbers = #tpu.dot_dimension_numbers<[1], [1], [0], [0], [0, 0, 1, 0], [], []>} : vector<16x32xf32>, vector<16x32xf32>, vector<16x16xf32> -> vector<16x16xf32>
    %c0_37 = arith.constant 0 : index
    %c0_38 = arith.constant 0 : index
    %174 = vector.load %arg1[%c0_37, %c0_38] : memref<16x16xf32, #tpu.memory_space<vmem>>, vector<16x16xf32>
    %175 = arith.addf %173, %174 : vector<16x16xf32>
    %cst_39 = arith.constant dense<0xFF800000> : vector<16xf32>
    %176 = vector.multi_reduction <maximumf>, %175, %cst_39 [1] : vector<16x16xf32> to vector<16xf32>
    %177 = vector.shape_cast %176 : vector<16xf32> to vector<16x1xf32>
    %178 = vector.broadcast %177 : vector<16x1xf32> to vector<16x16xf32>
    %179 = arith.subf %175, %178 : vector<16x16xf32>
    %180 = math.exp %179 : vector<16x16xf32>
    %cst_40 = arith.constant dense<0.000000e+00> : vector<16xf32>
    %181 = vector.multi_reduction <add>, %180, %cst_40 [1] : vector<16x16xf32> to vector<16xf32>
    %182 = vector.shape_cast %181 : vector<16xf32> to vector<16x1xf32>
    %183 = vector.broadcast %182 : vector<16x1xf32> to vector<16x16xf32>
    %184 = arith.divf %180, %183 : vector<16x16xf32>
    %cst_41 = arith.constant dense<0.000000e+00> : vector<16x32xf32>
    %185 = tpu.matmul %184, %172, %cst_41 {dimension_numbers = #tpu.dot_dimension_numbers<[1], [0], [0], [1], [0, 0, 1, 1], [], []>} : vector<16x16xf32>, vector<16x32xf32>, vector<16x32xf32> -> vector<16x32xf32>
    %c0_42 = arith.constant 0 : index
    %c0_43 = arith.constant 0 : index
    %186 = vector.load %arg5[%c0_42, %c0_43] : memref<32x128xf32, #tpu.memory_space<vmem>>, vector<32x128xf32>
    %cst_44 = arith.constant dense<0.000000e+00> : vector<16x128xf32>
    %187 = tpu.matmul %185, %186, %cst_44 {dimension_numbers = #tpu.dot_dimension_numbers<[1], [0], [0], [1], [0, 0, 1, 1], [], []>} : vector<16x32xf32>, vector<32x128xf32>, vector<16x128xf32> -> vector<16x128xf32>
    %c0_45 = arith.constant 0 : index
    %c0_46 = arith.constant 0 : index
    %188 = vector.load %arg6[%c0_45, %c0_46] : memref<1x128xf32, #tpu.memory_space<vmem>>, vector<1x128xf32>
    %189 = vector.broadcast %188 : vector<1x128xf32> to vector<16x128xf32>
    %190 = arith.addf %187, %189 : vector<16x128xf32>
    %c0_47 = arith.constant 0 : index
    %c0_48 = arith.constant 0 : index
    %191 = vector.load %arg7[%c0_47, %c0_48] : memref<16x128xf32, #tpu.memory_space<vmem>>, vector<16x128xf32>
    tpu.vector_store %arg7[%c0_47, %c0_48], %190 {strides = array<i32>} : memref<16x128xf32, #tpu.memory_space<vmem>>, vector<16x128xf32>,
    return
  }
}

</mosaic_0001>

<llo_original>
// kernel: tpu_custom_call.1
$region0: #{tpu_custom_call.1}
  #allocation0 [shape = 'u32[]', space=smem, size = 0x4, offset = 0x4, fixed_abs, tag = 'smem constant byte address 0x4 - core index']
  #allocation1 [shape = 'u32[144,128]{1,0:T(1,128)}', space=vmem, size = 0x12000, scoped, tag = 'internal scratch']
  #allocation2 [shape = 'f32[16,32]{1,0:T(8,128)}', space=vmem, size = 0x2000, scoped, tag = 'scratch operand']
  %s0 = inlined_call_operand.hbm [shape: f32[16,16], index: 0, kind: input, shape index: {}]
  %s1 = inlined_call_operand.hbm [shape: f32[16,16], index: 1, kind: input, shape index: {}]
  %s2 = inlined_call_operand.hbm [shape: f32[16,128], index: 2, kind: input, shape index: {}]
  %s3 = inlined_call_operand.hbm [shape: f32[32,128], index: 3, kind: input, shape index: {}]
  %s4 = inlined_call_operand.vmem [shape: f32[1,128], index: 4, kind: input, shape index: {}]
  %s5 = inlined_call_operand.hbm [shape: f32[32,128], index: 5, kind: input, shape index: {}]
  %s6 = inlined_call_operand.vmem [shape: f32[1,128], index: 6, kind: input, shape index: {}]
  %s7 = inlined_call_operand.hbm [shape: f32[16,128], index: 7, kind: output, shape index: {}]
  %s8 = sld [smem:[#allocation0]]
  $region58: #{tpu_custom_call.1} parent=0
    _
  %s10 = ssub.s32 1, %s8
  %s11 = scalar_select 0, %s10, %s8
  $region1: #{tpu_custom_call.1} parent=0
    #allocation3 [shape = 'u8[8192]{0}', space=vmem, size = 0x2000, scoped, tag = 'input window, operand 0, single buffered']
    #allocation4 [shape = 's32[1]{0}', space=sflag, size = 0x4, scoped, tag = 'scoped memory for tpu_custom_call.1']
    #allocation5 [shape = 's32[1]{0}', space=sflag, size = 0x4, scoped, tag = 'scoped memory for tpu_custom_call.1']
    #allocation6 [shape = 'u8[8192]{0}', space=vmem, size = 0x2000, scoped, tag = 'input window, operand 1, single buffered']
    #allocation7 [shape = 's32[1]{0}', space=sflag, size = 0x4, scoped, tag = 'scoped memory for tpu_custom_call.1']
    #allocation8 [shape = 'u8[8192]{0}', space=vmem, size = 0x2000, scoped, tag = 'input window, operand 2, single buffered']
    #allocation9 [shape = 'u8[16384]{0}', space=vmem, size = 0x4000, scoped, tag = 'input window, operand 3, single buffered']
    #allocation10 [shape = 's32[1]{0}', space=sflag, size = 0x4, scoped, tag = 'scoped memory for tpu_custom_call.1']
    #allocation11 [shape = 'u8[16384]{0}', space=vmem, size = 0x4000, scoped, tag = 'input window, operand 5, single buffered']
    #allocation12 [shape = 'u8[8192]{0}', space=vmem, size = 0x2000, scoped, tag = 'output window, operand 0, single buffered']
    %12 = vsyncpa [#allocation4], 0
    %13 = vsyncpa [#allocation7], 0
    %14 = vsyncpa [#allocation10], 0
    %15 = vsyncpa [#allocation5], 0
    // Predicated region
    $region2: #{tpu_custom_call.1} parent=1 // pred_check
      _
    $region3: #{tpu_custom_call.1} parent=1 // pred_check_branch
      %17 = sbr.rel (0) target = $region5
    $region4: #{tpu_custom_call.1} parent=1 // pred_region
      %s19 = ssub.s32 256, 256
      %20 = vsyncadd [#allocation4], %s19
      %s21 = sshll.u32 [#allocation3], 4
      %s22 = int_to_ptr.vmem [resolvable:$true] %s21
      %27 = dma.hbm_to_vmem [thread:$0]  %s0, 256, %s22, [#allocation4], 128, 128, 8
    $region5: #{tpu_custom_call.1} parent=1 // pred_fallthru
      _
    // Predicated region
    $region6: #{tpu_custom_call.1} parent=1 // pred_check
      _
    $region7: #{tpu_custom_call.1} parent=1 // pred_check_branch
      %29 = sbr.rel (0) target = $region9
    $region8: #{tpu_custom_call.1} parent=1 // pred_region
      %s31 = ssub.s32 256, 256
      %32 = vsyncadd [#allocation7], %s31
      %s33 = sshll.u32 [#allocation6], 4
      %s34 = int_to_ptr.vmem [resolvable:$true] %s33
      %39 = dma.hbm_to_vmem [thread:$0]  %s1, 256, %s34, [#allocation7], 128, 128, 8
    $region9: #{tpu_custom_call.1} parent=1 // pred_fallthru
      _
    // Predicated region
    $region10: #{tpu_custom_call.1} parent=1 // pred_check
      _
    $region11: #{tpu_custom_call.1} parent=1 // pred_check_branch
      %41 = sbr.rel (0) target = $region13
    $region12: #{tpu_custom_call.1} parent=1 // pred_region
      %s43 = ssub.s32 256, 256
      %44 = vsyncadd [#allocation7], %s43
      %s45 = sshll.u32 [#allocation8], 4
      %s46 = int_to_ptr.vmem [resolvable:$true] %s45
      %51 = dma.hbm_to_vmem [thread:$0]  %s2, 256, %s46, [#allocation7], 128, 128, 8
    $region13: #{tpu_custom_call.1} parent=1 // pred_fallthru
      _
    // Predicated region
    $region14: #{tpu_custom_call.1} parent=1 // pred_check
      _
    $region15: #{tpu_custom_call.1} parent=1 // pred_check_branch
      %53 = sbr.rel (0) target = $region17
    $region16: #{tpu_custom_call.1} parent=1 // pred_region
      %s55 = ssub.s32 512, 512
      %56 = vsyncadd [#allocation10], %s55
      %s57 = sshll.u32 [#allocation9], 4
      %s58 = int_to_ptr.vmem [resolvable:$true] %s57
      %63 = dma.hbm_to_vmem [thread:$0]  %s3, 512, %s58, [#allocation10], 128, 128, 8
    $region17: #{tpu_custom_call.1} parent=1 // pred_fallthru
      _
    // Predicated region
    $region18: #{tpu_custom_call.1} parent=1 // pred_check
      _
    $region19: #{tpu_custom_call.1} parent=1 // pred_check_branch
      %65 = sbr.rel (0) target = $region21
    $region20: #{tpu_custom_call.1} parent=1 // pred_region
      _
    $region21: #{tpu_custom_call.1} parent=1 // pred_fallthru
      _
    // Predicated region
    $region22: #{tpu_custom_call.1} parent=1 // pred_check
      _
    $region23: #{tpu_custom_call.1} parent=1 // pred_check_branch
      %67 = sbr.rel (0) target = $region25
    $region24: #{tpu_custom_call.1} parent=1 // pred_region
      %s69 = ssub.s32 512, 512
      %70 = vsyncadd [#allocation10], %s69
      %s71 = sshll.u32 [#allocation11], 4
      %s72 = int_to_ptr.vmem [resolvable:$true] %s71
      %77 = dma.hbm_to_vmem [thread:$0]  %s5, 512, %s72, [#allocation10], 128, 128, 8
    $region25: #{tpu_custom_call.1} parent=1 // pred_fallthru
      _
    // Predicated region
    $region26: #{tpu_custom_call.1} parent=1 // pred_check
      _
    $region27: #{tpu_custom_call.1} parent=1 // pred_check_branch
      %79 = sbr.rel (0) target = $region29
    $region28: #{tpu_custom_call.1} parent=1 // pred_region
      _
    $region29: #{tpu_custom_call.1} parent=1 // pred_fallthru
      _
    // Predicated region
    $region30: #{tpu_custom_call.1} parent=1 // pred_check
      _
    $region31: #{tpu_custom_call.1} parent=1 // pred_check_branch
      %81 = sbr.rel (0) target = $region33
    $region32: #{tpu_custom_call.1} parent=1 // pred_region
      %82 = dma.done [#allocation4], 256
    $region33: #{tpu_custom_call.1} parent=1 // pred_fallthru
      _
    // Predicated region
    $region34: #{tpu_custom_call.1} parent=1 // pred_check
      _
    $region35: #{tpu_custom_call.1} parent=1 // pred_check_branch
      %84 = sbr.rel (0) target = $region37
    $region36: #{tpu_custom_call.1} parent=1 // pred_region
      %85 = dma.done [#allocation7], 256
    $region37: #{tpu_custom_call.1} parent=1 // pred_fallthru
      _
    // Predicated region
    $region38: #{tpu_custom_call.1} parent=1 // pred_check
      _
    $region39: #{tpu_custom_call.1} parent=1 // pred_check_branch
      %87 = sbr.rel (0) target = $region41
    $region40: #{tpu_custom_call.1} parent=1 // pred_region
      %88 = dma.done [#allocation7], 256
    $region41: #{tpu_custom_call.1} parent=1 // pred_fallthru
      _
    // Predicated region
    $region42: #{tpu_custom_call.1} parent=1 // pred_check
      _
    $region43: #{tpu_custom_call.1} parent=1 // pred_check_branch
      %90 = sbr.rel (0) target = $region45
    $region44: #{tpu_custom_call.1} parent=1 // pred_region
      %91 = dma.done [#allocation10], 512
    $region45: #{tpu_custom_call.1} parent=1 // pred_fallthru
      _
    // Predicated region
    $region46: #{tpu_custom_call.1} parent=1 // pred_check
      _
    $region47: #{tpu_custom_call.1} parent=1 // pred_check_branch
      %93 = sbr.rel (0) target = $region49
    $region48: #{tpu_custom_call.1} parent=1 // pred_region
      %94 = dma.done [#allocation10], 512
    $region49: #{tpu_custom_call.1} parent=1 // pred_fallthru
      _
    %v95 = vld [vmem:[#allocation3] sm:$0xff]
    %v96 = vld [vmem:[#allocation3 + $0x8] sm:$0xff]
    %v97 = vld [vmem:[#allocation8] sm:$0xff]
    %v98 = vld [vmem:[#allocation8 + $0x8] sm:$0xff]
    %v99 = vld [vmem:[%s4] sm:$0x1]
    %v101 = vlaneseq
    %v102 = vshrl.u32 %v101, 7
    %v103 = vsub.s32 0, %v102
    %v104 = vrot.slane %v99, %v103
    %vm106 = vcmask 130048
    %v108 = vsel %vm106, %v95, 0
    %v111 = vsel %vm106, %v96, 0
    %113 = vmatprep.subr.mxu0 0.0
    %114 = vmatpush1.msra.mxu0 0.0
    %115 = vmatprep.subr.mxu0 0.0
    %116 = vmatpush1.msra.mxu0 0.0
    %117 = vmatprep.subr.mxu0 0.0
    %118 = vmatpush1.msra.mxu0 0.0
    %119 = vmatprep.subr.mxu0 0.0
    %120 = vmatpush1.msra.mxu0 0.0
    %121 = vmatprep.subr.mxu0 0.0
    %122 = vmatpush1.msra.mxu0 0.0
    %123 = vmatprep.subr.mxu0 0.0
    %124 = vmatpush1.msra.mxu0 0.0
    %125 = vmatprep.subr.mxu0 0.0
    %126 = vmatpush1.msra.mxu0 0.0
    %127 = vmatprep.subr.mxu0 0.0
    %128 = vmatpush1.msra.mxu0 0.0
    %129 = vmatprep.subr.mxu0 0.0
    %130 = vmatpush1.msra.mxu0 0.0
    %131 = vmatprep.subr.mxu0 0.0
    %132 = vmatpush1.msra.mxu0 0.0
    %133 = vmatprep.subr.mxu0 0.0
    %134 = vmatpush1.msra.mxu0 0.0
    %135 = vmatprep.subr.mxu0 0.0
    %136 = vmatpush1.msra.mxu0 0.0
    %137 = vmatprep.subr.mxu0 0.0
    %138 = vmatpush1.msra.mxu0 0.0
    %139 = vmatprep.subr.mxu0 0.0
    %140 = vmatpush1.msra.mxu0 0.0
    %141 = vmatprep.subr.mxu0 0.0
    %142 = vmatpush1.msra.mxu0 %v98
    %143 = vmatprep.subr.mxu0 0.0
    %144 = vmatpush1.msra.mxu0 %v97
    %145 = vmatprep.subr.mxu0 0.0
    %146 = vmatpush2.msra.mxu0 0.0
    %147 = vmatprep.subr.mxu0 0.0
    %148 = vmatpush2.msra.mxu0 0.0
    %149 = vmatprep.subr.mxu0 0.0
    %150 = vmatpush2.msra.mxu0 0.0
    %151 = vmatprep.subr.mxu0 0.0
    %152 = vmatpush2.msra.mxu0 0.0
    %153 = vmatprep.subr.mxu0 0.0
    %154 = vmatpush2.msra.mxu0 0.0
    %155 = vmatprep.subr.mxu0 0.0
    %156 = vmatpush2.msra.mxu0 0.0
    %157 = vmatprep.subr.mxu0 0.0
    %158 = vmatpush2.msra.mxu0 0.0
    %159 = vmatprep.subr.mxu0 0.0
    %160 = vmatpush2.msra.mxu0 0.0
    %161 = vmatprep.subr.mxu0 0.0
    %162 = vmatpush2.msra.mxu0 0.0
    %163 = vmatprep.subr.mxu0 0.0
    %164 = vmatpush2.msra.mxu0 0.0
    %165 = vmatprep.subr.mxu0 0.0
    %166 = vmatpush2.msra.mxu0 0.0
    %167 = vmatprep.subr.mxu0 0.0
    %168 = vmatpush2.msra.mxu0 0.0
    %169 = vmatprep.subr.mxu0 0.0
    %170 = vmatpush2.msra.mxu0 0.0
    %171 = vmatprep.subr.mxu0 0.0
    %172 = vmatpush2.msra.mxu0 0.0
    %173 = vmatprep.subr.mxu0 0.0
    %174 = vmatpush2.msra.mxu0 0.0
    %175 = vmatprep.subr.mxu0 0.0
    %176 = vmatpush2.msra.mxu0 0.0
    %177 = vmatprep.mubr.f32.mxu0 0.0
    %178 = vmatmul.mubr.f32.gmra.mxu0 %v108
    %v179 = vpop.f32.mrf.mxu0
    %v180 = vadd.f32 %v104, %v179
    %v181 = vpop.f32.mrf.mxu0
    %182 = vmatprep.mubr.f32.mxu0 0.0
    %183 = vmatmul.mubr.f32.gmra.mxu0 %v111
    %v184 = vpop.f32.mrf.mxu0
    %v185 = vadd.f32 %v104, %v184
    %v186 = vpop.f32.mrf.mxu0
    %187 = vdwg.mxu0
    %v188 = vld [vmem:[#allocation9] sm:$0xff]
    %v189 = vld [vmem:[#allocation9 + $0x8] sm:$0xff]
    %v190 = vld [vmem:[#allocation9 + $0x10] sm:$0xff]
    %v191 = vld [vmem:[#allocation9 + $0x18] sm:$0xff]
    %v192 = vlaneseq
    %v193 = vand.u32 %v192, 127
    %vm194 = vcmp.lt.s32.totalorder %v193, 96
    %vm195 = vcmask 261120
    %v197 = vsel %vm195, 0.0, 0
    %199 = vmatprep.subr.mxu0 0.0
    %200 = vmatpush1.msra.mxu0 0.0
    %201 = vmatprep.subr.mxu0 0.0
    %202 = vmatpush1.msra.mxu0 0.0
    %203 = vmatprep.subr.mxu0 0.0
    %204 = vmatpush1.msra.mxu0 0.0
    %205 = vmatprep.subr.mxu0 0.0
    %206 = vmatpush1.msra.mxu0 0.0
    %207 = vmatprep.subr.mxu0 0.0
    %208 = vmatpush1.msra.mxu0 0.0
    %209 = vmatprep.subr.mxu0 0.0
    %210 = vmatpush1.msra.mxu0 0.0
    %211 = vmatprep.subr.mxu0 0.0
    %212 = vmatpush1.msra.mxu0 0.0
    %213 = vmatprep.subr.mxu0 0.0
    %214 = vmatpush1.msra.mxu0 0.0
    %215 = vmatprep.subr.mxu0 0.0
    %216 = vmatpush1.msra.mxu0 0.0
    %217 = vmatprep.subr.mxu0 0.0
    %218 = vmatpush1.msra.mxu0 0.0
    %219 = vmatprep.subr.mxu0 0.0
    %220 = vmatpush1.msra.mxu0 0.0
    %221 = vmatprep.subr.mxu0 0.0
    %222 = vmatpush1.msra.mxu0 0.0
    %223 = vmatprep.subr.mxu0 0.0
    %224 = vmatpush1.msra.mxu0 %v191
    %225 = vmatprep.subr.mxu0 0.0
    %226 = vmatpush1.msra.mxu0 %v190
    %227 = vmatprep.subr.mxu0 0.0
    %228 = vmatpush1.msra.mxu0 %v189
    %229 = vmatprep.subr.mxu0 0.0
    %230 = vmatpush1.msra.mxu0 %v188
    %231 = vmatprep.subr.mxu0 0.0
    %232 = vmatpush2.msra.mxu0 0.0
    %233 = vmatprep.subr.mxu0 0.0
    %234 = vmatpush2.msra.mxu0 0.0
    %235 = vmatprep.subr.mxu0 0.0
    %236 = vmatpush2.msra.mxu0 0.0
    %237 = vmatprep.subr.mxu0 0.0
    %238 = vmatpush2.msra.mxu0 0.0
    %239 = vmatprep.subr.mxu0 0.0
    %240 = vmatpush2.msra.mxu0 0.0
    %241 = vmatprep.subr.mxu0 0.0
    %242 = vmatpush2.msra.mxu0 0.0
    %243 = vmatprep.subr.mxu0 0.0
    %244 = vmatpush2.msra.mxu0 0.0
    %245 = vmatprep.subr.mxu0 0.0
    %246 = vmatpush2.msra.mxu0 0.0
    %247 = vmatprep.subr.mxu0 0.0
    %248 = vmatpush2.msra.mxu0 0.0
    %249 = vmatprep.subr.mxu0 0.0
    %250 = vmatpush2.msra.mxu0 0.0
    %251 = vmatprep.subr.mxu0 0.0
    %252 = vmatpush2.msra.mxu0 0.0
    %253 = vmatprep.subr.mxu0 0.0
    %254 = vmatpush2.msra.mxu0 0.0
    %255 = vmatprep.subr.mxu0 0.0
    %256 = vmatpush2.msra.mxu0 0.0
    %257 = vmatprep.subr.mxu0 0.0
    %258 = vmatpush2.msra.mxu0 0.0
    %259 = vmatprep.subr.mxu0 0.0
    %260 = vmatpush2.msra.mxu0 0.0
    %261 = vmatprep.subr.mxu0 0.0
    %262 = vmatpush2.msra.mxu0 0.0
    %263 = vmatprep.mubr.f32.mxu0 0.0
    %264 = vmatmul.mubr.f32.gmra.mxu0 %v197
    %v265 = vpop.f32.mrf.mxu0
    %v266 = vadd.f32 0.0, %v265
    %v267 = vpop.f32.mrf.mxu0
    %268 = vdwg.mxu0
    %v269 = vadd.f32 %v180, %v266
    %v270 = vxor.u32 %v269, 2147483648
    %v271 = vmul.f32 %v270, 1.442695
    %v272 = vpow.pop %v271
    %v273 = vadd.f32 %v272, 1.0
    %v274 = vrcp.pop %v273
    %v275 = vmul.f32 1.0, %v274
    %v276 = vtanh.pop %v269
    %v277 = vsel %vm194, %v275, %v276
    %v278 = vmul.f32 %v277, 0.0
    %280 = vrot.lane.b32.xlu0 %v277, 32
    %v281 = vpop.permute.xlu0 %280
    %v283 = vmul.f32 %v277, %v281
    %285 = vrot.lane.b32.xlu0 %v283, 32
    %v286 = vpop.permute.xlu0 %285
    %v288 = vadd.f32 %v278, %v286
    %v289 = vtanh.pop %v288
    %291 = vrot.lane.b32.xlu0 %v289, 32
    %v292 = vpop.permute.xlu0 %291
    %v294 = vmul.f32 %v277, %v292
    %296 = vrot.lane.b32.xlu0 %v294, 64
    %v297 = vpop.permute.xlu0 %296
    %vm299 = vcmask 254976
    %300 = vst.msk [vmem:[#allocation2] sm:$0x3] %vm299, %v297
    %v301 = vsel %vm195, %v297, 0
    %303 = vmatprep.subr.mxu0 0.0
    %304 = vmatpush1.msra.mxu0 0.0
    %305 = vmatprep.subr.mxu0 0.0
    %306 = vmatpush1.msra.mxu0 0.0
    %307 = vmatprep.subr.mxu0 0.0
    %308 = vmatpush1.msra.mxu0 0.0
    %309 = vmatprep.subr.mxu0 0.0
    %310 = vmatpush1.msra.mxu0 0.0
    %311 = vmatprep.subr.mxu0 0.0
    %312 = vmatpush1.msra.mxu0 0.0
    %313 = vmatprep.subr.mxu0 0.0
    %314 = vmatpush1.msra.mxu0 0.0
    %315 = vmatprep.subr.mxu0 0.0
    %316 = vmatpush1.msra.mxu0 0.0
    %317 = vmatprep.subr.mxu0 0.0
    %318 = vmatpush1.msra.mxu0 0.0
    %319 = vmatprep.subr.mxu0 0.0
    %320 = vmatpush1.msra.mxu0 0.0
    %321 = vmatprep.subr.mxu0 0.0
    %322 = vmatpush1.msra.mxu0 0.0
    %323 = vmatprep.subr.mxu0 0.0
    %324 = vmatpush1.msra.mxu0 0.0
    %325 = vmatprep.subr.mxu0 0.0
    %326 = vmatpush1.msra.mxu0 0.0
    %327 = vmatprep.subr.mxu0 0.0
    %328 = vmatpush1.msra.mxu0 %v191
    %329 = vmatprep.subr.mxu0 0.0
    %330 = vmatpush1.msra.mxu0 %v190
    %331 = vmatprep.subr.mxu0 0.0
    %332 = vmatpush1.msra.mxu0 %v189
    %333 = vmatprep.subr.mxu0 0.0
    %334 = vmatpush1.msra.mxu0 %v188
    %335 = vmatprep.subr.mxu0 0.0
    %336 = vmatpush2.msra.mxu0 0.0
    %337 = vmatprep.subr.mxu0 0.0
    %338 = vmatpush2.msra.mxu0 0.0
    %339 = vmatprep.subr.mxu0 0.0
    %340 = vmatpush2.msra.mxu0 0.0
    %341 = vmatprep.subr.mxu0 0.0
    %342 = vmatpush2.msra.mxu0 0.0
    %343 = vmatprep.subr.mxu0 0.0
    %344 = vmatpush2.msra.mxu0 0.0
    %345 = vmatprep.subr.mxu0 0.0
    %346 = vmatpush2.msra.mxu0 0.0
    %347 = vmatprep.subr.mxu0 0.0
    %348 = vmatpush2.msra.mxu0 0.0
    %349 = vmatprep.subr.mxu0 0.0
    %350 = vmatpush2.msra.mxu0 0.0
    %351 = vmatprep.subr.mxu0 0.0
    %352 = vmatpush2.msra.mxu0 0.0
    %353 = vmatprep.subr.mxu0 0.0
    %354 = vmatpush2.msra.mxu0 0.0
    %355 = vmatprep.subr.mxu0 0.0
    %356 = vmatpush2.msra.mxu0 0.0
    %357 = vmatprep.subr.mxu0 0.0
    %358 = vmatpush2.msra.mxu0 0.0
    %359 = vmatprep.subr.mxu0 0.0
    %360 = vmatpush2.msra.mxu0 0.0
    %361 = vmatprep.subr.mxu0 0.0
    %362 = vmatpush2.msra.mxu0 0.0
    %363 = vmatprep.subr.mxu0 0.0
    %364 = vmatpush2.msra.mxu0 0.0
    %365 = vmatprep.subr.mxu0 0.0
    %366 = vmatpush2.msra.mxu0 0.0
    %367 = vmatprep.mubr.f32.mxu0 0.0
    %368 = vmatmul.mubr.f32.gmra.mxu0 %v301
    %v369 = vpop.f32.mrf.mxu0
    %v370 = vadd.f32 0.0, %v369
    %v371 = vpop.f32.mrf.mxu0
    %372 = vdwg.mxu0
    %v374 = vrot.slane %v370, 6
    %v376 = vadd.f32 %v180, %v374
    %v377 = vxor.u32 %v376, 2147483648
    %v378 = vmul.f32 %v377, 1.442695
    %v379 = vpow.pop %v378
    %v380 = vadd.f32 %v379, 1.0
    %v381 = vrcp.pop %v380
    %v382 = vmul.f32 1.0, %v381
    %v383 = vtanh.pop %v376
    %v384 = vsel %vm194, %v382, %v383
    %v386 = vrot.slane %v288, 6
    %v388 = vmul.f32 %v384, %v386
    %390 = vrot.lane.b32.xlu0 %v384, 32
    %v391 = vpop.permute.xlu0 %390
    %v393 = vmul.f32 %v384, %v391
    %395 = vrot.lane.b32.xlu0 %v393, 32
    %v396 = vpop.permute.xlu0 %395
    %v398 = vadd.f32 %v388, %v396
    %v399 = vtanh.pop %v398
    %401 = vrot.lane.b32.xlu0 %v399, 32
    %v402 = vpop.permute.xlu0 %401
    %v404 = vmul.f32 %v384, %v402
    %406 = vrot.lane.b32.xlu0 %v404, 64
    %v407 = vpop.permute.xlu0 %406
    %vm409 = vcmask 257026
    %410 = vst.msk [vmem:[#allocation2] sm:$0xc] %vm409, %v407
    %v411 = vrot.slane %v404, 2
    %412 = vrot.lane.b32.xlu0 %v411, 64
    %v413 = vpop.permute.xlu0 %412
    %v414 = vsel %vm195, %v413, 0
    %416 = vmatprep.subr.mxu0 0.0
    %417 = vmatpush1.msra.mxu0 0.0
    %418 = vmatprep.subr.mxu0 0.0
    %419 = vmatpush1.msra.mxu0 0.0
    %420 = vmatprep.subr.mxu0 0.0
    %421 = vmatpush1.msra.mxu0 0.0
    %422 = vmatprep.subr.mxu0 0.0
    %423 = vmatpush1.msra.mxu0 0.0
    %424 = vmatprep.subr.mxu0 0.0
    %425 = vmatpush1.msra.mxu0 0.0
    %426 = vmatprep.subr.mxu0 0.0
    %427 = vmatpush1.msra.mxu0 0.0
    %428 = vmatprep.subr.mxu0 0.0
    %429 = vmatpush1.msra.mxu0 0.0
    %430 = vmatprep.subr.mxu0 0.0
    %431 = vmatpush1.msra.mxu0 0.0
    %432 = vmatprep.subr.mxu0 0.0
    %433 = vmatpush1.msra.mxu0 0.0
    %434 = vmatprep.subr.mxu0 0.0
    %435 = vmatpush1.msra.mxu0 0.0
    %436 = vmatprep.subr.mxu0 0.0
    %437 = vmatpush1.msra.mxu0 0.0
    %438 = vmatprep.subr.mxu0 0.0
    %439 = vmatpush1.msra.mxu0 0.0
    %440 = vmatprep.subr.mxu0 0.0
    %441 = vmatpush1.msra.mxu0 %v191
    %442 = vmatprep.subr.mxu0 0.0
    %443 = vmatpush1.msra.mxu0 %v190
    %444 = vmatprep.subr.mxu0 0.0
    %445 = vmatpush1.msra.mxu0 %v189
    %446 = vmatprep.subr.mxu0 0.0
    %447 = vmatpush1.msra.mxu0 %v188
    %448 = vmatprep.subr.mxu0 0.0
    %449 = vmatpush2.msra.mxu0 0.0
    %450 = vmatprep.subr.mxu0 0.0
    %451 = vmatpush2.msra.mxu0 0.0
    %452 = vmatprep.subr.mxu0 0.0
    %453 = vmatpush2.msra.mxu0 0.0
    %454 = vmatprep.subr.mxu0 0.0
    %455 = vmatpush2.msra.mxu0 0.0
    %456 = vmatprep.subr.mxu0 0.0
    %457 = vmatpush2.msra.mxu0 0.0
    %458 = vmatprep.subr.mxu0 0.0
    %459 = vmatpush2.msra.mxu0 0.0
    %460 = vmatprep.subr.mxu0 0.0
    %461 = vmatpush2.msra.mxu0 0.0
    %462 = vmatprep.subr.mxu0 0.0
    %463 = vmatpush2.msra.mxu0 0.0
    %464 = vmatprep.subr.mxu0 0.0
    %465 = vmatpush2.msra.mxu0 0.0
    %466 = vmatprep.subr.mxu0 0.0
    %467 = vmatpush2.msra.mxu0 0.0
    %468 = vmatprep.subr.mxu0 0.0
    %469 = vmatpush2.msra.mxu0 0.0
    %470 = vmatprep.subr.mxu0 0.0
    %471 = vmatpush2.msra.mxu0 0.0
    %472 = vmatprep.subr.mxu0 0.0
    %473 = vmatpush2.msra.mxu0 0.0
    %474 = vmatprep.subr.mxu0 0.0
    %475 = vmatpush2.msra.mxu0 0.0
    %476 = vmatprep.subr.mxu0 0.0
    %477 = vmatpush2.msra.mxu0 0.0
    %478 = vmatprep.subr.mxu0 0.0
    %479 = vmatpush2.msra.mxu0 0.0
    %480 = vmatprep.mubr.f32.mxu0 0.0
    %481 = vmatmul.mubr.f32.gmra.mxu0 %v414
    %v482 = vpop.f32.mrf.mxu0
    %v483 = vadd.f32 0.0, %v482
    %v484 = vpop.f32.mrf.mxu0
    %485 = vdwg.mxu0
    %v487 = vrot.slane %v483, 4
    %v489 = vadd.f32 %v180, %v487
    %v490 = vxor.u32 %v489, 2147483648
    %v491 = vmul.f32 %v490, 1.442695
    %v492 = vpow.pop %v491
    %v493 = vadd.f32 %v492, 1.0
    %v494 = vrcp.pop %v493
    %v495 = vmul.f32 1.0, %v494
    %v496 = vtanh.pop %v489
    %v497 = vsel %vm194, %v495, %v496
    %v499 = vrot.slane %v398, 6
    %v501 = vmul.f32 %v497, %v499
    %503 = vrot.lane.b32.xlu0 %v497, 32
    %v504 = vpop.permute.xlu0 %503
    %v506 = vmul.f32 %v497, %v504
    %508 = vrot.lane.b32.xlu0 %v506, 32
    %v509 = vpop.permute.xlu0 %508
    %v511 = vadd.f32 %v501, %v509
    %v512 = vtanh.pop %v511
    %514 = vrot.lane.b32.xlu0 %v512, 32
    %v515 = vpop.permute.xlu0 %514
    %v517 = vmul.f32 %v497, %v515
    %519 = vrot.lane.b32.xlu0 %v517, 64
    %v520 = vpop.permute.xlu0 %519
    %vm522 = vcmask 259076
    %523 = vst.msk [vmem:[#allocation2] sm:$0x30] %vm522, %v520
    %v524 = vrot.slane %v517, 4
    %525 = vrot.lane.b32.xlu0 %v524, 64
    %v526 = vpop.permute.xlu0 %525
    %v527 = vsel %vm195, %v526, 0
    %529 = vmatprep.subr.mxu0 0.0
    %530 = vmatpush1.msra.mxu0 0.0
    %531 = vmatprep.subr.mxu0 0.0
    %532 = vmatpush1.msra.mxu0 0.0
    %533 = vmatprep.subr.mxu0 0.0
    %534 = vmatpush1.msra.mxu0 0.0
    %535 = vmatprep.subr.mxu0 0.0
    %536 = vmatpush1.msra.mxu0 0.0
    %537 = vmatprep.subr.mxu0 0.0
    %538 = vmatpush1.msra.mxu0 0.0
    %539 = vmatprep.subr.mxu0 0.0
    %540 = vmatpush1.msra.mxu0 0.0
    %541 = vmatprep.subr.mxu0 0.0
    %542 = vmatpush1.msra.mxu0 0.0
    %543 = vmatprep.subr.mxu0 0.0
    %544 = vmatpush1.msra.mxu0 0.0
    %545 = vmatprep.subr.mxu0 0.0
    %546 = vmatpush1.msra.mxu0 0.0
    %547 = vmatprep.subr.mxu0 0.0
    %548 = vmatpush1.msra.mxu0 0.0
    %549 = vmatprep.subr.mxu0 0.0
    %550 = vmatpush1.msra.mxu0 0.0
    %551 = vmatprep.subr.mxu0 0.0
    %552 = vmatpush1.msra.mxu0 0.0
    %553 = vmatprep.subr.mxu0 0.0
    %554 = vmatpush1.msra.mxu0 %v191
    %555 = vmatprep.subr.mxu0 0.0
    %556 = vmatpush1.msra.mxu0 %v190
    %557 = vmatprep.subr.mxu0 0.0
    %558 = vmatpush1.msra.mxu0 %v189
    %559 = vmatprep.subr.mxu0 0.0
    %560 = vmatpush1.msra.mxu0 %v188
    %561 = vmatprep.subr.mxu0 0.0
    %562 = vmatpush2.msra.mxu0 0.0
    %563 = vmatprep.subr.mxu0 0.0
    %564 = vmatpush2.msra.mxu0 0.0
    %565 = vmatprep.subr.mxu0 0.0
    %566 = vmatpush2.msra.mxu0 0.0
    %567 = vmatprep.subr.mxu0 0.0
    %568 = vmatpush2.msra.mxu0 0.0
    %569 = vmatprep.subr.mxu0 0.0
    %570 = vmatpush2.msra.mxu0 0.0
    %571 = vmatprep.subr.mxu0 0.0
    %572 = vmatpush2.msra.mxu0 0.0
    %573 = vmatprep.subr.mxu0 0.0
    %574 = vmatpush2.msra.mxu0 0.0
    %575 = vmatprep.subr.mxu0 0.0
    %576 = vmatpush2.msra.mxu0 0.0
    %577 = vmatprep.subr.mxu0 0.0
    %578 = vmatpush2.msra.mxu0 0.0
    %579 = vmatprep.subr.mxu0 0.0
    %580 = vmatpush2.msra.mxu0 0.0
    %581 = vmatprep.subr.mxu0 0.0
    %582 = vmatpush2.msra.mxu0 0.0
    %583 = vmatprep.subr.mxu0 0.0
    %584 = vmatpush2.msra.mxu0 0.0
    %585 = vmatprep.subr.mxu0 0.0
    %586 = vmatpush2.msra.mxu0 0.0
    %587 = vmatprep.subr.mxu0 0.0
    %588 = vmatpush2.msra.mxu0 0.0
    %589 = vmatprep.subr.mxu0 0.0
    %590 = vmatpush2.msra.mxu0 0.0
    %591 = vmatprep.subr.mxu0 0.0
    %592 = vmatpush2.msra.mxu0 0.0
    %593 = vmatprep.mubr.f32.mxu0 0.0
    %594 = vmatmul.mubr.f32.gmra.mxu0 %v527
    %v595 = vpop.f32.mrf.mxu0
    %v596 = vadd.f32 0.0, %v595
    %v597 = vpop.f32.mrf.mxu0
    %598 = vdwg.mxu0
    %v600 = vrot.slane %v596, 2
    %v602 = vadd.f32 %v180, %v600
    %v603 = vxor.u32 %v602, 2147483648
    %v604 = vmul.f32 %v603, 1.442695
    %v605 = vpow.pop %v604
    %v606 = vadd.f32 %v605, 1.0
    %v607 = vrcp.pop %v606
    %v608 = vmul.f32 1.0, %v607
    %v609 = vtanh.pop %v602
    %v610 = vsel %vm194, %v608, %v609
    %v612 = vrot.slane %v511, 6
    %v614 = vmul.f32 %v610, %v612
    %616 = vrot.lane.b32.xlu0 %v610, 32
    %v617 = vpop.permute.xlu0 %616
    %v619 = vmul.f32 %v610, %v617
    %621 = vrot.lane.b32.xlu0 %v619, 32
    %v622 = vpop.permute.xlu0 %621
    %v624 = vadd.f32 %v614, %v622
    %v625 = vtanh.pop %v624
    %627 = vrot.lane.b32.xlu0 %v625, 32
    %v628 = vpop.permute.xlu0 %627
    %v630 = vmul.f32 %v610, %v628
    %632 = vrot.lane.b32.xlu0 %v630, 64
    %v633 = vpop.permute.xlu0 %632
    %vm635 = vcmask 261126
    %636 = vst.msk [vmem:[#allocation2] sm:$0xc0] %vm635, %v633
    %v637 = vrot.slane %v630, 6
    %638 = vrot.lane.b32.xlu0 %v637, 64
    %v639 = vpop.permute.xlu0 %638
    %v640 = vsel %vm195, %v639, 0
    %642 = vmatprep.subr.mxu0 0.0
    %643 = vmatpush1.msra.mxu0 0.0
    %644 = vmatprep.subr.mxu0 0.0
    %645 = vmatpush1.msra.mxu0 0.0
    %646 = vmatprep.subr.mxu0 0.0
    %647 = vmatpush1.msra.mxu0 0.0
    %648 = vmatprep.subr.mxu0 0.0
    %649 = vmatpush1.msra.mxu0 0.0
    %650 = vmatprep.subr.mxu0 0.0
    %651 = vmatpush1.msra.mxu0 0.0
    %652 = vmatprep.subr.mxu0 0.0
    %653 = vmatpush1.msra.mxu0 0.0
    %654 = vmatprep.subr.mxu0 0.0
    %655 = vmatpush1.msra.mxu0 0.0
    %656 = vmatprep.subr.mxu0 0.0
    %657 = vmatpush1.msra.mxu0 0.0
    %658 = vmatprep.subr.mxu0 0.0
    %659 = vmatpush1.msra.mxu0 0.0
    %660 = vmatprep.subr.mxu0 0.0
    %661 = vmatpush1.msra.mxu0 0.0
    %662 = vmatprep.subr.mxu0 0.0
    %663 = vmatpush1.msra.mxu0 0.0
    %664 = vmatprep.subr.mxu0 0.0
    %665 = vmatpush1.msra.mxu0 0.0
    %666 = vmatprep.subr.mxu0 0.0
    %667 = vmatpush1.msra.mxu0 %v191
    %668 = vmatprep.subr.mxu0 0.0
    %669 = vmatpush1.msra.mxu0 %v190
    %670 = vmatprep.subr.mxu0 0.0
    %671 = vmatpush1.msra.mxu0 %v189
    %672 = vmatprep.subr.mxu0 0.0
    %673 = vmatpush1.msra.mxu0 %v188
    %674 = vmatprep.subr.mxu0 0.0
    %675 = vmatpush2.msra.mxu0 0.0
    %676 = vmatprep.subr.mxu0 0.0
    %677 = vmatpush2.msra.mxu0 0.0
    %678 = vmatprep.subr.mxu0 0.0
    %679 = vmatpush2.msra.mxu0 0.0
    %680 = vmatprep.subr.mxu0 0.0
    %681 = vmatpush2.msra.mxu0 0.0
    %682 = vmatprep.subr.mxu0 0.0
    %683 = vmatpush2.msra.mxu0 0.0
    %684 = vmatprep.subr.mxu0 0.0
    %685 = vmatpush2.msra.mxu0 0.0
    %686 = vmatprep.subr.mxu0 0.0
    %687 = vmatpush2.msra.mxu0 0.0
    %688 = vmatprep.subr.mxu0 0.0
    %689 = vmatpush2.msra.mxu0 0.0
    %690 = vmatprep.subr.mxu0 0.0
    %691 = vmatpush2.msra.mxu0 0.0
    %692 = vmatprep.subr.mxu0 0.0
    %693 = vmatpush2.msra.mxu0 0.0
    %694 = vmatprep.subr.mxu0 0.0
    %695 = vmatpush2.msra.mxu0 0.0
    %696 = vmatprep.subr.mxu0 0.0
    %697 = vmatpush2.msra.mxu0 0.0
    %698 = vmatprep.subr.mxu0 0.0
    %699 = vmatpush2.msra.mxu0 0.0
    %700 = vmatprep.subr.mxu0 0.0
    %701 = vmatpush2.msra.mxu0 0.0
    %702 = vmatprep.subr.mxu0 0.0
    %703 = vmatpush2.msra.mxu0 0.0
    %704 = vmatprep.subr.mxu0 0.0
    %705 = vmatpush2.msra.mxu0 0.0
    %706 = vmatprep.mubr.f32.mxu0 0.0
    %707 = vmatmul.mubr.f32.gmra.mxu0 %v640
    %v708 = vpop.f32.mrf.mxu0
    %v709 = vadd.f32 0.0, %v708
    %v710 = vpop.f32.mrf.mxu0
    %711 = vdwg.mxu0
    %v712 = vadd.f32 %v185, %v709
    %v713 = vxor.u32 %v712, 2147483648
    %v714 = vmul.f32 %v713, 1.442695
    %v715 = vpow.pop %v714
    %v716 = vadd.f32 %v715, 1.0
    %v717 = vrcp.pop %v716
    %v718 = vmul.f32 1.0, %v717
    %v719 = vtanh.pop %v712
    %v720 = vsel %vm194, %v718, %v719
    %v722 = vrot.slane %v624, 6
    %v724 = vmul.f32 %v720, %v722
    %726 = vrot.lane.b32.xlu0 %v720, 32
    %v727 = vpop.permute.xlu0 %726
    %v729 = vmul.f32 %v720, %v727
    %731 = vrot.lane.b32.xlu0 %v729, 32
    %v732 = vpop.permute.xlu0 %731
    %v734 = vadd.f32 %v724, %v732
    %v735 = vtanh.pop %v734
    %737 = vrot.lane.b32.xlu0 %v735, 32
    %v738 = vpop.permute.xlu0 %737
    %v740 = vmul.f32 %v720, %v738
    %742 = vrot.lane.b32.xlu0 %v740, 64
    %v743 = vpop.permute.xlu0 %742
    %745 = vst.msk [vmem:[#allocation2 + $0x8] sm:$0x3] %vm299, %v743
    %v746 = vsel %vm195, %v743, 0
    %748 = vmatprep.subr.mxu0 0.0
    %749 = vmatpush1.msra.mxu0 0.0
    %750 = vmatprep.subr.mxu0 0.0
    %751 = vmatpush1.msra.mxu0 0.0
    %752 = vmatprep.subr.mxu0 0.0
    %753 = vmatpush1.msra.mxu0 0.0
    %754 = vmatprep.subr.mxu0 0.0
    %755 = vmatpush1.msra.mxu0 0.0
    %756 = vmatprep.subr.mxu0 0.0
    %757 = vmatpush1.msra.mxu0 0.0
    %758 = vmatprep.subr.mxu0 0.0
    %759 = vmatpush1.msra.mxu0 0.0
    %760 = vmatprep.subr.mxu0 0.0
    %761 = vmatpush1.msra.mxu0 0.0
    %762 = vmatprep.subr.mxu0 0.0
    %763 = vmatpush1.msra.mxu0 0.0
    %764 = vmatprep.subr.mxu0 0.0
    %765 = vmatpush1.msra.mxu0 0.0
    %766 = vmatprep.subr.mxu0 0.0
    %767 = vmatpush1.msra.mxu0 0.0
    %768 = vmatprep.subr.mxu0 0.0
    %769 = vmatpush1.msra.mxu0 0.0
    %770 = vmatprep.subr.mxu0 0.0
    %771 = vmatpush1.msra.mxu0 0.0
    %772 = vmatprep.subr.mxu0 0.0
    %773 = vmatpush1.msra.mxu0 %v191
    %774 = vmatprep.subr.mxu0 0.0
    %775 = vmatpush1.msra.mxu0 %v190
    %776 = vmatprep.subr.mxu0 0.0
    %777 = vmatpush1.msra.mxu0 %v189
    %778 = vmatprep.subr.mxu0 0.0
    %779 = vmatpush1.msra.mxu0 %v188
    %780 = vmatprep.subr.mxu0 0.0
    %781 = vmatpush2.msra.mxu0 0.0
    %782 = vmatprep.subr.mxu0 0.0
    %783 = vmatpush2.msra.mxu0 0.0
    %784 = vmatprep.subr.mxu0 0.0
    %785 = vmatpush2.msra.mxu0 0.0
    %786 = vmatprep.subr.mxu0 0.0
    %787 = vmatpush2.msra.mxu0 0.0
    %788 = vmatprep.subr.mxu0 0.0
    %789 = vmatpush2.msra.mxu0 0.0
    %790 = vmatprep.subr.mxu0 0.0
    %791 = vmatpush2.msra.mxu0 0.0
    %792 = vmatprep.subr.mxu0 0.0
    %793 = vmatpush2.msra.mxu0 0.0
    %794 = vmatprep.subr.mxu0 0.0
    %795 = vmatpush2.msra.mxu0 0.0
    %796 = vmatprep.subr.mxu0 0.0
    %797 = vmatpush2.msra.mxu0 0.0
    %798 = vmatprep.subr.mxu0 0.0
    %799 = vmatpush2.msra.mxu0 0.0
    %800 = vmatprep.subr.mxu0 0.0
    %801 = vmatpush2.msra.mxu0 0.0
    %802 = vmatprep.subr.mxu0 0.0
    %803 = vmatpush2.msra.mxu0 0.0
    %804 = vmatprep.subr.mxu0 0.0
    %805 = vmatpush2.msra.mxu0 0.0
    %806 = vmatprep.subr.mxu0 0.0
    %807 = vmatpush2.msra.mxu0 0.0
    %808 = vmatprep.subr.mxu0 0.0
    %809 = vmatpush2.msra.mxu0 0.0
    %810 = vmatprep.subr.mxu0 0.0
    %811 = vmatpush2.msra.mxu0 0.0
    %812 = vmatprep.mubr.f32.mxu0 0.0
    %813 = vmatmul.mubr.f32.gmra.mxu0 %v746
    %v814 = vpop.f32.mrf.mxu0
    %v815 = vadd.f32 0.0, %v814
    %v816 = vpop.f32.mrf.mxu0
    %817 = vdwg.mxu0
    %v819 = vrot.slane %v815, 6
    %v821 = vadd.f32 %v185, %v819
    %v822 = vxor.u32 %v821, 2147483648
    %v823 = vmul.f32 %v822, 1.442695
    %v824 = vpow.pop %v823
    %v825 = vadd.f32 %v824, 1.0
    %v826 = vrcp.pop %v825
    %v827 = vmul.f32 1.0, %v826
    %v828 = vtanh.pop %v821
    %v829 = vsel %vm194, %v827, %v828
    %v831 = vrot.slane %v734, 6
    %v833 = vmul.f32 %v829, %v831
    %835 = vrot.lane.b32.xlu0 %v829, 32
    %v836 = vpop.permute.xlu0 %835
    %v838 = vmul.f32 %v829, %v836
    %840 = vrot.lane.b32.xlu0 %v838, 32
    %v841 = vpop.permute.xlu0 %840
    %v843 = vadd.f32 %v833, %v841
    %v844 = vtanh.pop %v843
    %846 = vrot.lane.b32.xlu0 %v844, 32
    %v847 = vpop.permute.xlu0 %846
    %v849 = vmul.f32 %v829, %v847
    %851 = vrot.lane.b32.xlu0 %v849, 64
    %v852 = vpop.permute.xlu0 %851
    %854 = vst.msk [vmem:[#allocation2 + $0x8] sm:$0xc] %vm409, %v852
    %v855 = vrot.slane %v849, 2
    %856 = vrot.lane.b32.xlu0 %v855, 64
    %v857 = vpop.permute.xlu0 %856
    %v858 = vsel %vm195, %v857, 0
    %860 = vmatprep.subr.mxu0 0.0
    %861 = vmatpush1.msra.mxu0 0.0
    %862 = vmatprep.subr.mxu0 0.0
    %863 = vmatpush1.msra.mxu0 0.0
    %864 = vmatprep.subr.mxu0 0.0
    %865 = vmatpush1.msra.mxu0 0.0
    %866 = vmatprep.subr.mxu0 0.0
    %867 = vmatpush1.msra.mxu0 0.0
    %868 = vmatprep.subr.mxu0 0.0
    %869 = vmatpush1.msra.mxu0 0.0
    %870 = vmatprep.subr.mxu0 0.0
    %871 = vmatpush1.msra.mxu0 0.0
    %872 = vmatprep.subr.mxu0 0.0
    %873 = vmatpush1.msra.mxu0 0.0
    %874 = vmatprep.subr.mxu0 0.0
    %875 = vmatpush1.msra.mxu0 0.0
    %876 = vmatprep.subr.mxu0 0.0
    %877 = vmatpush1.msra.mxu0 0.0
    %878 = vmatprep.subr.mxu0 0.0
    %879 = vmatpush1.msra.mxu0 0.0
    %880 = vmatprep.subr.mxu0 0.0
    %881 = vmatpush1.msra.mxu0 0.0
    %882 = vmatprep.subr.mxu0 0.0
    %883 = vmatpush1.msra.mxu0 0.0
    %884 = vmatprep.subr.mxu0 0.0
    %885 = vmatpush1.msra.mxu0 %v191
    %886 = vmatprep.subr.mxu0 0.0
    %887 = vmatpush1.msra.mxu0 %v190
    %888 = vmatprep.subr.mxu0 0.0
    %889 = vmatpush1.msra.mxu0 %v189
    %890 = vmatprep.subr.mxu0 0.0
    %891 = vmatpush1.msra.mxu0 %v188
    %892 = vmatprep.subr.mxu0 0.0
    %893 = vmatpush2.msra.mxu0 0.0
    %894 = vmatprep.subr.mxu0 0.0
    %895 = vmatpush2.msra.mxu0 0.0
    %896 = vmatprep.subr.mxu0 0.0
    %897 = vmatpush2.msra.mxu0 0.0
    %898 = vmatprep.subr.mxu0 0.0
    %899 = vmatpush2.msra.mxu0 0.0
    %900 = vmatprep.subr.mxu0 0.0
    %901 = vmatpush2.msra.mxu0 0.0
    %902 = vmatprep.subr.mxu0 0.0
    %903 = vmatpush2.msra.mxu0 0.0
    %904 = vmatprep.subr.mxu0 0.0
    %905 = vmatpush2.msra.mxu0 0.0
    %906 = vmatprep.subr.mxu0 0.0
    %907 = vmatpush2.msra.mxu0 0.0
    %908 = vmatprep.subr.mxu0 0.0
    %909 = vmatpush2.msra.mxu0 0.0
    %910 = vmatprep.subr.mxu0 0.0
    %911 = vmatpush2.msra.mxu0 0.0
    %912 = vmatprep.subr.mxu0 0.0
    %913 = vmatpush2.msra.mxu0 0.0
    %914 = vmatprep.subr.mxu0 0.0
    %915 = vmatpush2.msra.mxu0 0.0
    %916 = vmatprep.subr.mxu0 0.0
    %917 = vmatpush2.msra.mxu0 0.0
    %918 = vmatprep.subr.mxu0 0.0
    %919 = vmatpush2.msra.mxu0 0.0
    %920 = vmatprep.subr.mxu0 0.0
    %921 = vmatpush2.msra.mxu0 0.0
    %922 = vmatprep.subr.mxu0 0.0
    %923 = vmatpush2.msra.mxu0 0.0
    %924 = vmatprep.mubr.f32.mxu0 0.0
    %925 = vmatmul.mubr.f32.gmra.mxu0 %v858
    %v926 = vpop.f32.mrf.mxu0
    %v927 = vadd.f32 0.0, %v926
    %v928 = vpop.f32.mrf.mxu0
    %929 = vdwg.mxu0
    %v931 = vrot.slane %v927, 4
    %v933 = vadd.f32 %v185, %v931
    %v934 = vxor.u32 %v933, 2147483648
    %v935 = vmul.f32 %v934, 1.442695
    %v936 = vpow.pop %v935
    %v937 = vadd.f32 %v936, 1.0
    %v938 = vrcp.pop %v937
    %v939 = vmul.f32 1.0, %v938
    %v940 = vtanh.pop %v933
    %v941 = vsel %vm194, %v939, %v940
    %v943 = vrot.slane %v843, 6
    %v945 = vmul.f32 %v941, %v943
    %947 = vrot.lane.b32.xlu0 %v941, 32
    %v948 = vpop.permute.xlu0 %947
    %v950 = vmul.f32 %v941, %v948
    %952 = vrot.lane.b32.xlu0 %v950, 32
    %v953 = vpop.permute.xlu0 %952
    %v955 = vadd.f32 %v945, %v953
    %v956 = vtanh.pop %v955
    %958 = vrot.lane.b32.xlu0 %v956, 32
    %v959 = vpop.permute.xlu0 %958
    %v961 = vmul.f32 %v941, %v959
    %963 = vrot.lane.b32.xlu0 %v961, 64
    %v964 = vpop.permute.xlu0 %963
    %966 = vst.msk [vmem:[#allocation2 + $0x8] sm:$0x30] %vm522, %v964
    %v967 = vrot.slane %v961, 4
    %968 = vrot.lane.b32.xlu0 %v967, 64
    %v969 = vpop.permute.xlu0 %968
    %v970 = vsel %vm195, %v969, 0
    %972 = vmatprep.subr.mxu0 0.0
    %973 = vmatpush1.msra.mxu0 0.0
    %974 = vmatprep.subr.mxu0 0.0
    %975 = vmatpush1.msra.mxu0 0.0
    %976 = vmatprep.subr.mxu0 0.0
    %977 = vmatpush1.msra.mxu0 0.0
    %978 = vmatprep.subr.mxu0 0.0
    %979 = vmatpush1.msra.mxu0 0.0
    %980 = vmatprep.subr.mxu0 0.0
    %981 = vmatpush1.msra.mxu0 0.0
    %982 = vmatprep.subr.mxu0 0.0
    %983 = vmatpush1.msra.mxu0 0.0
    %984 = vmatprep.subr.mxu0 0.0
    %985 = vmatpush1.msra.mxu0 0.0
    %986 = vmatprep.subr.mxu0 0.0
    %987 = vmatpush1.msra.mxu0 0.0
    %988 = vmatprep.subr.mxu0 0.0
    %989 = vmatpush1.msra.mxu0 0.0
    %990 = vmatprep.subr.mxu0 0.0
    %991 = vmatpush1.msra.mxu0 0.0
    %992 = vmatprep.subr.mxu0 0.0
    %993 = vmatpush1.msra.mxu0 0.0
    %994 = vmatprep.subr.mxu0 0.0
    %995 = vmatpush1.msra.mxu0 0.0
    %996 = vmatprep.subr.mxu0 0.0
    %997 = vmatpush1.msra.mxu0 %v191
    %998 = vmatprep.subr.mxu0 0.0
    %999 = vmatpush1.msra.mxu0 %v190
    %1000 = vmatprep.subr.mxu0 0.0
    %1001 = vmatpush1.msra.mxu0 %v189
    %1002 = vmatprep.subr.mxu0 0.0
    %1003 = vmatpush1.msra.mxu0 %v188
    %1004 = vmatprep.subr.mxu0 0.0
    %1005 = vmatpush2.msra.mxu0 0.0
    %1006 = vmatprep.subr.mxu0 0.0
    %1007 = vmatpush2.msra.mxu0 0.0
    %1008 = vmatprep.subr.mxu0 0.0
    %1009 = vmatpush2.msra.mxu0 0.0
    %1010 = vmatprep.subr.mxu0 0.0
    %1011 = vmatpush2.msra.mxu0 0.0
    %1012 = vmatprep.subr.mxu0 0.0
    %1013 = vmatpush2.msra.mxu0 0.0
    %1014 = vmatprep.subr.mxu0 0.0
    %1015 = vmatpush2.msra.mxu0 0.0
    %1016 = vmatprep.subr.mxu0 0.0
    %1017 = vmatpush2.msra.mxu0 0.0
    %1018 = vmatprep.subr.mxu0 0.0
    %1019 = vmatpush2.msra.mxu0 0.0
    %1020 = vmatprep.subr.mxu0 0.0
    %1021 = vmatpush2.msra.mxu0 0.0
    %1022 = vmatprep.subr.mxu0 0.0
    %1023 = vmatpush2.msra.mxu0 0.0
    %1024 = vmatprep.subr.mxu0 0.0
    %1025 = vmatpush2.msra.mxu0 0.0
    %1026 = vmatprep.subr.mxu0 0.0
    %1027 = vmatpush2.msra.mxu0 0.0
    %1028 = vmatprep.subr.mxu0 0.0
    %1029 = vmatpush2.msra.mxu0 0.0
    %1030 = vmatprep.subr.mxu0 0.0
    %1031 = vmatpush2.msra.mxu0 0.0
    %1032 = vmatprep.subr.mxu0 0.0
    %1033 = vmatpush2.msra.mxu0 0.0
    %1034 = vmatprep.subr.mxu0 0.0
    %1035 = vmatpush2.msra.mxu0 0.0
    %1036 = vmatprep.mubr.f32.mxu0 0.0
    %1037 = vmatmul.mubr.f32.gmra.mxu0 %v970
    %v1038 = vpop.f32.mrf.mxu0
    %v1039 = vadd.f32 0.0, %v1038
    %v1040 = vpop.f32.mrf.mxu0
    %1041 = vdwg.mxu0
    %v1043 = vrot.slane %v1039, 2
    %v1045 = vadd.f32 %v185, %v1043
    %v1046 = vxor.u32 %v1045, 2147483648
    %v1047 = vmul.f32 %v1046, 1.442695
    %v1048 = vpow.pop %v1047
    %v1049 = vadd.f32 %v1048, 1.0
    %v1050 = vrcp.pop %v1049
    %v1051 = vmul.f32 1.0, %v1050
    %v1052 = vtanh.pop %v1045
    %v1053 = vsel %vm194, %v1051, %v1052
    %v1055 = vrot.slane %v955, 6
    %v1057 = vmul.f32 %v1053, %v1055
    %1059 = vrot.lane.b32.xlu0 %v1053, 32
    %v1060 = vpop.permute.xlu0 %1059
    %v1062 = vmul.f32 %v1053, %v1060
    %1064 = vrot.lane.b32.xlu0 %v1062, 32
    %v1065 = vpop.permute.xlu0 %1064
    %v1067 = vadd.f32 %v1057, %v1065
    %v1068 = vtanh.pop %v1067
    %1070 = vrot.lane.b32.xlu0 %v1068, 32
    %v1071 = vpop.permute.xlu0 %1070
    %v1073 = vmul.f32 %v1053, %v1071
    %1075 = vrot.lane.b32.xlu0 %v1073, 64
    %v1076 = vpop.permute.xlu0 %1075
    %1078 = vst.msk [vmem:[#allocation2 + $0x8] sm:$0xc0] %vm635, %v1076
    %v1079 = vld [vmem:[#allocation2] sm:$0xff]
    %v1080 = vld [vmem:[#allocation2 + $0x8] sm:$0xff]
    %v1081 = vld [vmem:[#allocation6] sm:$0xff]
    %v1082 = vld [vmem:[#allocation6 + $0x8] sm:$0xff]
    %v1084 = vsel %vm195, %v1079, 0
    %v1087 = vsel %vm195, %v1080, 0
    %1089 = vmatprep.subr.mxu0 0.0
    %1090 = vmatpush1.xpose.msra.mxu0 0.0
    %1091 = vmatprep.subr.mxu0 0.0
    %1092 = vmatpush1.xpose.msra.mxu0 0.0
    %1093 = vmatprep.subr.mxu0 0.0
    %1094 = vmatpush1.xpose.msra.mxu0 0.0
    %1095 = vmatprep.subr.mxu0 0.0
    %1096 = vmatpush1.xpose.msra.mxu0 0.0
    %1097 = vmatprep.subr.mxu0 0.0
    %1098 = vmatpush1.xpose.msra.mxu0 0.0
    %1099 = vmatprep.subr.mxu0 0.0
    %1100 = vmatpush1.xpose.msra.mxu0 0.0
    %1101 = vmatprep.subr.mxu0 0.0
    %1102 = vmatpush1.xpose.msra.mxu0 0.0
    %1103 = vmatprep.subr.mxu0 0.0
    %1104 = vmatpush1.xpose.msra.mxu0 0.0
    %1105 = vmatprep.subr.mxu0 0.0
    %1106 = vmatpush1.xpose.msra.mxu0 0.0
    %1107 = vmatprep.subr.mxu0 0.0
    %1108 = vmatpush1.xpose.msra.mxu0 0.0
    %1109 = vmatprep.subr.mxu0 0.0
    %1110 = vmatpush1.xpose.msra.mxu0 0.0
    %1111 = vmatprep.subr.mxu0 0.0
    %1112 = vmatpush1.xpose.msra.mxu0 0.0
    %1113 = vmatprep.subr.mxu0 0.0
    %1114 = vmatpush1.xpose.msra.mxu0 0.0
    %1115 = vmatprep.subr.mxu0 0.0
    %1116 = vmatpush1.xpose.msra.mxu0 0.0
    %1117 = vmatprep.subr.mxu0 0.0
    %1118 = vmatpush1.xpose.msra.mxu0 %v1087
    %1119 = vmatprep.subr.mxu0 0.0
    %1120 = vmatpush1.xpose.msra.mxu0 %v1084
    %1121 = vmatprep.subr.mxu0 0.0
    %1122 = vmatpush2.xpose.msra.mxu0 0.0
    %1123 = vmatprep.subr.mxu0 0.0
    %1124 = vmatpush2.xpose.msra.mxu0 0.0
    %1125 = vmatprep.subr.mxu0 0.0
    %1126 = vmatpush2.xpose.msra.mxu0 0.0
    %1127 = vmatprep.subr.mxu0 0.0
    %1128 = vmatpush2.xpose.msra.mxu0 0.0
    %1129 = vmatprep.subr.mxu0 0.0
    %1130 = vmatpush2.xpose.msra.mxu0 0.0
    %1131 = vmatprep.subr.mxu0 0.0
    %1132 = vmatpush2.xpose.msra.mxu0 0.0
    %1133 = vmatprep.subr.mxu0 0.0
    %1134 = vmatpush2.xpose.msra.mxu0 0.0
    %1135 = vmatprep.subr.mxu0 0.0
    %1136 = vmatpush2.xpose.msra.mxu0 0.0
    %1137 = vmatprep.subr.mxu0 0.0
    %1138 = vmatpush2.xpose.msra.mxu0 0.0
    %1139 = vmatprep.subr.mxu0 0.0
    %1140 = vmatpush2.xpose.msra.mxu0 0.0
    %1141 = vmatprep.subr.mxu0 0.0
    %1142 = vmatpush2.xpose.msra.mxu0 0.0
    %1143 = vmatprep.subr.mxu0 0.0
    %1144 = vmatpush2.xpose.msra.mxu0 0.0
    %1145 = vmatprep.subr.mxu0 0.0
    %1146 = vmatpush2.xpose.msra.mxu0 0.0
    %1147 = vmatprep.subr.mxu0 0.0
    %1148 = vmatpush2.xpose.msra.mxu0 0.0
    %1149 = vmatprep.subr.mxu0 0.0
    %1150 = vmatpush2.xpose.msra.mxu0 0.0
    %1151 = vmatprep.subr.mxu0 0.0
    %1152 = vmatpush2.xpose.msra.mxu0 0.0
    %1153 = vmatprep.mubr.f32.mxu0 0.0
    %1154 = vmatmul.mubr.f32.gmra.mxu0 %v1084
    %v1155 = vpop.f32.mrf.mxu0
    %v1156 = vadd.f32 %v1081, %v1155
    %v1157 = vpop.f32.mrf.mxu0
    %1158 = vmatprep.mubr.f32.mxu0 0.0
    %1159 = vmatmul.mubr.f32.gmra.mxu0 %v1087
    %v1160 = vpop.f32.mrf.mxu0
    %v1161 = vadd.f32 %v1082, %v1160
    %v1162 = vpop.f32.mrf.mxu0
    %1163 = vdwg.mxu0
    %v1164 = vsel %vm106, %v1156, -inf
    %1165 = vmax.xlane.f32.xlu0 %v1164
    %v1166 = vpop.xlane.xlu0 %1165
    %v1167 = vsel %vm106, %v1161, -inf
    %1168 = vmax.xlane.f32.xlu0 %v1167
    %v1169 = vpop.xlane.xlu0 %1168
    %v1170 = vsub.f32 %v1156, %v1166
    %v1171 = vsub.f32 %v1161, %v1169
    %v1172 = vmul.f32 %v1170, 1.442695
    %v1173 = vpow.pop %v1172
    %v1174 = vmul.f32 %v1171, 1.442695
    %v1175 = vpow.pop %v1174
    %v1176 = vsel %vm106, %v1173, 0.0
    %1177 = vadd.xlane.f32.xlu0 %v1176
    %v1178 = vpop.xlane.xlu0 %1177
    %v1179 = vsel %vm106, %v1175, 0.0
    %1180 = vadd.xlane.f32.xlu0 %v1179
    %v1181 = vpop.xlane.xlu0 %1180
    %v1182 = vrcp.pop %v1178
    %v1183 = vmul.f32 %v1173, %v1182
    %v1184 = vrcp.pop %v1181
    %v1185 = vmul.f32 %v1175, %v1184
    %v1187 = vsel %vm106, %v1183, 0
    %v1190 = vsel %vm106, %v1185, 0
    %1192 = vmatprep.subr.mxu0 0.0
    %1193 = vmatpush1.msra.mxu0 0.0
    %1194 = vmatprep.subr.mxu0 0.0
    %1195 = vmatpush1.msra.mxu0 0.0
    %1196 = vmatprep.subr.mxu0 0.0
    %1197 = vmatpush1.msra.mxu0 0.0
    %1198 = vmatprep.subr.mxu0 0.0
    %1199 = vmatpush1.msra.mxu0 0.0
    %1200 = vmatprep.subr.mxu0 0.0
    %1201 = vmatpush1.msra.mxu0 0.0
    %1202 = vmatprep.subr.mxu0 0.0
    %1203 = vmatpush1.msra.mxu0 0.0
    %1204 = vmatprep.subr.mxu0 0.0
    %1205 = vmatpush1.msra.mxu0 0.0
    %1206 = vmatprep.subr.mxu0 0.0
    %1207 = vmatpush1.msra.mxu0 0.0
    %1208 = vmatprep.subr.mxu0 0.0
    %1209 = vmatpush1.msra.mxu0 0.0
    %1210 = vmatprep.subr.mxu0 0.0
    %1211 = vmatpush1.msra.mxu0 0.0
    %1212 = vmatprep.subr.mxu0 0.0
    %1213 = vmatpush1.msra.mxu0 0.0
    %1214 = vmatprep.subr.mxu0 0.0
    %1215 = vmatpush1.msra.mxu0 0.0
    %1216 = vmatprep.subr.mxu0 0.0
    %1217 = vmatpush1.msra.mxu0 0.0
    %1218 = vmatprep.subr.mxu0 0.0
    %1219 = vmatpush1.msra.mxu0 0.0
    %1220 = vmatprep.subr.mxu0 0.0
    %1221 = vmatpush1.msra.mxu0 %v1080
    %1222 = vmatprep.subr.mxu0 0.0
    %1223 = vmatpush1.msra.mxu0 %v1079
    %1224 = vmatprep.subr.mxu0 0.0
    %1225 = vmatpush2.msra.mxu0 0.0
    %1226 = vmatprep.subr.mxu0 0.0
    %1227 = vmatpush2.msra.mxu0 0.0
    %1228 = vmatprep.subr.mxu0 0.0
    %1229 = vmatpush2.msra.mxu0 0.0
    %1230 = vmatprep.subr.mxu0 0.0
    %1231 = vmatpush2.msra.mxu0 0.0
    %1232 = vmatprep.subr.mxu0 0.0
    %1233 = vmatpush2.msra.mxu0 0.0
    %1234 = vmatprep.subr.mxu0 0.0
    %1235 = vmatpush2.msra.mxu0 0.0
    %1236 = vmatprep.subr.mxu0 0.0
    %1237 = vmatpush2.msra.mxu0 0.0
    %1238 = vmatprep.subr.mxu0 0.0
    %1239 = vmatpush2.msra.mxu0 0.0
    %1240 = vmatprep.subr.mxu0 0.0
    %1241 = vmatpush2.msra.mxu0 0.0
    %1242 = vmatprep.subr.mxu0 0.0
    %1243 = vmatpush2.msra.mxu0 0.0
    %1244 = vmatprep.subr.mxu0 0.0
    %1245 = vmatpush2.msra.mxu0 0.0
    %1246 = vmatprep.subr.mxu0 0.0
    %1247 = vmatpush2.msra.mxu0 0.0
    %1248 = vmatprep.subr.mxu0 0.0
    %1249 = vmatpush2.msra.mxu0 0.0
    %1250 = vmatprep.subr.mxu0 0.0
    %1251 = vmatpush2.msra.mxu0 0.0
    %1252 = vmatprep.subr.mxu0 0.0
    %1253 = vmatpush2.msra.mxu0 0.0
    %1254 = vmatprep.subr.mxu0 0.0
    %1255 = vmatpush2.msra.mxu0 0.0
    %1256 = vmatprep.mubr.f32.mxu0 0.0
    %1257 = vmatmul.mubr.f32.gmra.mxu0 %v1187
    %v1258 = vpop.f32.mrf.mxu0
    %v1259 = vadd.f32 0.0, %v1258
    %v1260 = vpop.f32.mrf.mxu0
    %1261 = vmatprep.mubr.f32.mxu0 0.0
    %1262 = vmatmul.mubr.f32.gmra.mxu0 %v1190
    %v1263 = vpop.f32.mrf.mxu0
    %v1264 = vadd.f32 0.0, %v1263
    %v1265 = vpop.f32.mrf.mxu0
    %1266 = vdwg.mxu0
    %v1267 = vld [vmem:[#allocation11] sm:$0xff]
    %v1268 = vld [vmem:[#allocation11 + $0x8] sm:$0xff]
    %v1269 = vld [vmem:[#allocation11 + $0x10] sm:$0xff]
    %v1270 = vld [vmem:[#allocation11 + $0x18] sm:$0xff]
    %v1271 = vld [vmem:[%s6] sm:$0x1]
    %v1273 = vlaneseq
    %v1274 = vshrl.u32 %v1273, 7
    %v1275 = vsub.s32 0, %v1274
    %v1276 = vrot.slane %v1271, %v1275
    %v1279 = vsel %vm195, %v1259, 0
    %v1282 = vsel %vm195, %v1264, 0
    %1284 = vmatprep.subr.mxu0 0.0
    %1285 = vmatpush1.msra.mxu0 0.0
    %1286 = vmatprep.subr.mxu0 0.0
    %1287 = vmatpush1.msra.mxu0 0.0
    %1288 = vmatprep.subr.mxu0 0.0
    %1289 = vmatpush1.msra.mxu0 0.0
    %1290 = vmatprep.subr.mxu0 0.0
    %1291 = vmatpush1.msra.mxu0 0.0
    %1292 = vmatprep.subr.mxu0 0.0
    %1293 = vmatpush1.msra.mxu0 0.0
    %1294 = vmatprep.subr.mxu0 0.0
    %1295 = vmatpush1.msra.mxu0 0.0
    %1296 = vmatprep.subr.mxu0 0.0
    %1297 = vmatpush1.msra.mxu0 0.0
    %1298 = vmatprep.subr.mxu0 0.0
    %1299 = vmatpush1.msra.mxu0 0.0
    %1300 = vmatprep.subr.mxu0 0.0
    %1301 = vmatpush1.msra.mxu0 0.0
    %1302 = vmatprep.subr.mxu0 0.0
    %1303 = vmatpush1.msra.mxu0 0.0
    %1304 = vmatprep.subr.mxu0 0.0
    %1305 = vmatpush1.msra.mxu0 0.0
    %1306 = vmatprep.subr.mxu0 0.0
    %1307 = vmatpush1.msra.mxu0 0.0
    %1308 = vmatprep.subr.mxu0 0.0
    %1309 = vmatpush1.msra.mxu0 %v1270
    %1310 = vmatprep.subr.mxu0 0.0
    %1311 = vmatpush1.msra.mxu0 %v1269
    %1312 = vmatprep.subr.mxu0 0.0
    %1313 = vmatpush1.msra.mxu0 %v1268
    %1314 = vmatprep.subr.mxu0 0.0
    %1315 = vmatpush1.msra.mxu0 %v1267
    %1316 = vmatprep.subr.mxu0 0.0
    %1317 = vmatpush2.msra.mxu0 0.0
    %1318 = vmatprep.subr.mxu0 0.0
    %1319 = vmatpush2.msra.mxu0 0.0
    %1320 = vmatprep.subr.mxu0 0.0
    %1321 = vmatpush2.msra.mxu0 0.0
    %1322 = vmatprep.subr.mxu0 0.0
    %1323 = vmatpush2.msra.mxu0 0.0
    %1324 = vmatprep.subr.mxu0 0.0
    %1325 = vmatpush2.msra.mxu0 0.0
    %1326 = vmatprep.subr.mxu0 0.0
    %1327 = vmatpush2.msra.mxu0 0.0
    %1328 = vmatprep.subr.mxu0 0.0
    %1329 = vmatpush2.msra.mxu0 0.0
    %1330 = vmatprep.subr.mxu0 0.0
    %1331 = vmatpush2.msra.mxu0 0.0
    %1332 = vmatprep.subr.mxu0 0.0
    %1333 = vmatpush2.msra.mxu0 0.0
    %1334 = vmatprep.subr.mxu0 0.0
    %1335 = vmatpush2.msra.mxu0 0.0
    %1336 = vmatprep.subr.mxu0 0.0
    %1337 = vmatpush2.msra.mxu0 0.0
    %1338 = vmatprep.subr.mxu0 0.0
    %1339 = vmatpush2.msra.mxu0 0.0
    %1340 = vmatprep.subr.mxu0 0.0
    %1341 = vmatpush2.msra.mxu0 0.0
    %1342 = vmatprep.subr.mxu0 0.0
    %1343 = vmatpush2.msra.mxu0 0.0
    %1344 = vmatprep.subr.mxu0 0.0
    %1345 = vmatpush2.msra.mxu0 0.0
    %1346 = vmatprep.subr.mxu0 0.0
    %1347 = vmatpush2.msra.mxu0 0.0
    %1348 = vmatprep.mubr.f32.mxu0 0.0
    %1349 = vmatmul.mubr.f32.gmra.mxu0 %v1279
    %v1350 = vpop.f32.mrf.mxu0
    %v1351 = vadd.f32 %v1276, %v1350
    %v1352 = vpop.f32.mrf.mxu0
    %1353 = vmatprep.mubr.f32.mxu0 0.0
    %1354 = vmatmul.mubr.f32.gmra.mxu0 %v1282
    %v1355 = vpop.f32.mrf.mxu0
    %v1356 = vadd.f32 %v1276, %v1355
    %v1357 = vpop.f32.mrf.mxu0
    %1358 = vdwg.mxu0
    %1359 = vst [vmem:[#allocation12] sm:$0xff] %v1351
    %1360 = vst [vmem:[#allocation12 + $0x8] sm:$0xff] %v1356
    // Predicated region
    $region50: #{tpu_custom_call.1} parent=1 // pred_check
      _
    $region51: #{tpu_custom_call.1} parent=1 // pred_check_branch
      %1362 = sbr.rel (0) target = $region53
    $region52: #{tpu_custom_call.1} parent=1 // pred_region
      %s1364 = ssub.s32 256, 256
      %1365 = vsyncadd [#allocation5], %s1364
      %s1366 = sshll.u32 [#allocation12], 4
      %s1367 = int_to_ptr.vmem [resolvable:$true] %s1366
      %1372 = dma.vmem_to_hbm [thread:$0]  %s1367, 256, %s7, [#allocation5], 128, 128, 8
    $region53: #{tpu_custom_call.1} parent=1 // pred_fallthru
      _
    // Predicated region
    $region54: #{tpu_custom_call.1} parent=1 // pred_check
      _
    $region55: #{tpu_custom_call.1} parent=1 // pred_check_branch
      %1374 = sbr.rel (0) target = $region57
    $region56: #{tpu_custom_call.1} parent=1 // pred_region
      %1375 = dma.done [#allocation5], 256
    $region57: #{tpu_custom_call.1} parent=1 // pred_fallthru
      _
    %1376 = vsyncpa [#allocation4], 1
    %1377 = vsyncpa [#allocation7], 1
    %1378 = vsyncpa [#allocation10], 1
    %1379 = vsyncpa [#allocation5], 1

</llo_original>
